<compile_context>
chip_gen: v7x
topology: tpu7x:2x2x1
jax: 0.10.0
libtpu: 0.0.40
codegen_flags: <defaults>
</compile_context>

<pallas_src>
import functools

import jax
import jax.numpy as jnp
import numpy as np
from jax.experimental import pallas as pl
from jax.experimental.pallas import tpu as pltpu

C_PAD = 128  # classifier output padded to one full lane group


# ----------------------------------------------------------------------------
# Fused kernel: one batch block per grid step.
# ----------------------------------------------------------------------------
def _textcnn_fused_kernel(tgt_ref, win_ref, w_all_ref, mask_ref, bias_ref,
                          clsw_ref, clsb_ref, out_ref, *, block_b, seq_len,
                          num_classes):
    """Refs:
      tgt_ref  : (B_total,)         int32  SMEM (scalar prefetch)
      win_ref  : (B_blk*S, kmax*E)  bf16   im2col windows
      w_all_ref: (kmax*E, nk*F)     bf16   all conv branches (K zero-padded)
      mask_ref : (S, nk*F)          f32    0 on valid time steps, -1e30 otherwise
      bias_ref : (1, nk*F)          f32    conv biases
      clsw_ref : (nk*F, C_PAD)      bf16   classifier weight (lane padded)
      clsb_ref : (1, C_PAD)         f32    classifier bias (-1e30 in pad lanes)
      out_ref  : (B_blk, C_PAD)     f32    lanes [0, C): logits, lane C: CE loss
    """
    B, S = block_b, seq_len
    NF = w_all_ref.shape[1]

    # --- all conv branches in ONE MXU matmul ---------------------------------
    scores = jnp.dot(win_ref[...], w_all_ref[...],
                     preferred_element_type=jnp.float32)        # (B*S, NF) f32
    scores = scores.reshape(B, S, NF) + mask_ref[...][None, :, :]

    # max-pool over time, then bias + ReLU (max commutes with +const, ReLU is
    # monotone).  The (B, nk*F) feature slab needs no concat.
    pooled = jnp.max(scores, axis=1)                            # (B, NF) f32
    feat = jnp.maximum(pooled + bias_ref[...], 0.0)

    # --- classifier (padded to 128 lanes) -------------------------------------
    logits = jnp.dot(feat.astype(jnp.bfloat16), clsw_ref[...],
                     preferred_element_type=jnp.float32) + clsb_ref[...]

    # --- per-row softmax cross entropy ----------------------------------------
    # Padded lanes sit at -1e30 so they drop out of both max and log-sum-exp.
    # Keep everything f32 so the sentinel stays finite.
    m = jnp.max(logits, axis=-1, keepdims=True)
    lse = m + jnp.log(jnp.sum(jnp.exp(logits - m), axis=-1, keepdims=True))

    row = jax.lax.broadcasted_iota(jnp.int32, (B, C_PAD), 0)
    col = jax.lax.broadcasted_iota(jnp.int32, (B, C_PAD), 1)
    base = pl.program_id(0) * B
    # Per-row target from SMEM scalar reads, broadcast into a lane-dense tile.
    # (Out-of-range targets would silently contribute 0; inputs are trusted.)
    tgt_bcast = jnp.zeros((B, C_PAD), jnp.int32)
    for r in range(B):
        tgt_bcast = jnp.where(row == r, tgt_ref[base + r], tgt_bcast)
    tgt_logit = jnp.sum(jnp.where(col == tgt_bcast, logits, 0.0),
                        axis=-1, keepdims=True)
    loss_rows = lse - tgt_logit                                 # (B, 1) f32

    # Fold the per-row loss into the unused padded lane `num_classes` of the
    # lane-dense logits slab -> one unmasked store, one output DMA.
    out_ref[...] = jnp.where(col == num_classes, loss_rows, logits)


# ----------------------------------------------------------------------------
# Generation-aware block selection
# ----------------------------------------------------------------------------
def _num_tensorcores_per_chip():
    try:
        kind = jax.devices()[0].device_kind.lower()
    except Exception:
        return 1
    return 2 if "v7" in kind else 1  # v5e/v6e: 1 TC per chip; v7x: 2 TCs


def _pick_block_b(batch, seq_len, num_tensorcores):
    """Rows per grid step.  Single-TC chips (v5e/v6e): one step covering the
    whole batch (the grid is a serial loop there).  Multi-TC chips (v7x): one
    parallel step per core, capped so each step's conv matmul still fills a
    256-row MXU pass once the batch is large enough."""
    if num_tensorcores <= 1 or batch % num_tensorcores:
        return batch
    per_core = batch // num_tensorcores
    if per_core % 8:
        return batch
    fill = max(8, -(-256 // seq_len))   # rows filling one 256-row MXU pass
    blk = 8
    while blk <= per_core:
        if batch % blk == 0 and blk >= fill:
            return blk
        blk += 8
    return per_core


# ----------------------------------------------------------------------------
# Forward wrapper
# ----------------------------------------------------------------------------
def textcnn_forward(params, input_ids, input_mask, target):
    del input_mask  # unused in the reference forward pass
    filter_sizes = tuple(params["filter_sizes"])
    nk = len(filter_sizes)
    k_max = max(filter_sizes)

    # Embedding gather kept as XLA glue (toy table); activations -> bf16.
    emb_bf = params["embedding"].astype(jnp.bfloat16)
    x_emb = jnp.take(emb_bf, input_ids, axis=0)                  # (B, S, E) bf16
    B, S, E = x_emb.shape
    F = params[f"conv_w_{filter_sizes[0]}"].shape[2]
    C = params["cls_w"].shape[0]
    NF, KE = nk * F, k_max * E
    assert C < C_PAD

    # im2col in the wrapper (XLA): a single (B*S, k_max*E) window tensor.
    # Positions past the sequence end are zero-padded; invalid time steps per
    # branch are excluded from the max-pool by the additive mask below.
    x_pad = jnp.pad(x_emb, ((0, 0), (0, k_max - 1), (0, 0)))
    win = jnp.concatenate([x_pad[:, j:j + S, :] for j in range(k_max)],
                          axis=-1).reshape(B * S, KE)            # (B*S, KE) bf16

    # All conv branches in one weight matrix: K zero-padded to k_max*E,
    # branches concatenated along N.
    w_cols = []
    for k in filter_sizes:
        wk = params[f"conv_w_{k}"].reshape(k * E, F).astype(jnp.float32)
        w_cols.append(jnp.pad(wk, ((0, KE - k * E), (0, 0))))
    w_all = jnp.concatenate(w_cols, axis=1).astype(jnp.bfloat16)  # (KE, NF)

    bias_all = jnp.concatenate([params[f"conv_b_{k}"] for k in filter_sizes]
                               ).reshape(1, NF).astype(jnp.float32)

    # Single additive validity mask: 0 where t <= S-k (valid), -1e30 otherwise.
    t_idx = jnp.arange(S, dtype=jnp.int32)[:, None]
    limits = jnp.concatenate(
        [jnp.full((F,), S - k + 1, jnp.int32) for k in filter_sizes])[None, :]
    mask_add = jnp.where(t_idx < limits, 0.0, -1e30).astype(jnp.float32)  # (S, NF)

    # Classifier padded to 128 lanes: zero weight columns, -1e30 bias so the
    # padded logits vanish from max / log-sum-exp inside the kernel.
    cls_w_pad = (jnp.zeros((NF, C_PAD), jnp.float32)
                 .at[:, :C].set(params["cls_w"].T.astype(jnp.float32))
                 .astype(jnp.bfloat16))
    cls_b_pad = (jnp.full((1, C_PAD), -1e30, jnp.float32)
                 .at[0, :C].set(params["cls_b"].astype(jnp.float32)))

    tgt = target.astype(jnp.int32).reshape(B)

    block_b = _pick_block_b(B, S, _num_tensorcores_per_chip())
    grid = (B // block_b,)

    kernel = functools.partial(_textcnn_fused_kernel, block_b=block_b,
                               seq_len=S, num_classes=C)

    out = pl.pallas_call(
        kernel,
        out_shape=jax.ShapeDtypeStruct((B, C_PAD), jnp.float32),
        grid_spec=pltpu.PrefetchScalarGridSpec(
            num_scalar_prefetch=1,          # target -> SMEM
            grid=grid,
            in_specs=[
                pl.BlockSpec((block_b * S, KE), lambda b, *_: (b, 0)),  # windows
                pl.BlockSpec((KE, NF), lambda b, *_: (0, 0)),           # conv W
                pl.BlockSpec((S, NF), lambda b, *_: (0, 0)),            # mask
                pl.BlockSpec((1, NF), lambda b, *_: (0, 0)),            # conv b
                pl.BlockSpec((NF, C_PAD), lambda b, *_: (0, 0)),        # cls W
                pl.BlockSpec((1, C_PAD), lambda b, *_: (0, 0)),         # cls b
            ],
            out_specs=pl.BlockSpec((block_b, C_PAD), lambda b, *_: (b, 0)),
        ),
        compiler_params=pltpu.CompilerParams(
            dimension_semantics=("parallel",)),
    )(tgt, win, w_all, mask_add, bias_all, cls_w_pad, cls_b_pad)

    logits = out[:, :C]
    loss = jnp.mean(out[:, C])
    return loss, logits


# ----------------------------------------------------------------------------
# Pure-JAX reference mirroring the kernel's bf16-input / f32-accumulate numerics
# ----------------------------------------------------------------------------
def textcnn_reference(params, input_ids, input_mask, target):
    del input_mask
    filter_sizes = tuple(params["filter_sizes"])
    emb = params["embedding"].astype(jnp.bfloat16).astype(jnp.float32)
    x = jnp.take(emb, input_ids, axis=0)                         # (B, S, E)
    feats = []
    for k in filter_sizes:
        w = params[f"conv_w_{k}"].astype(jnp.bfloat16).astype(jnp.float32)
        b = params[f"conv_b_{k}"]
        T = x.shape[1] - k + 1
        sc = sum(jnp.einsum("bte,ef->btf", x[:, j:j + T, :], w[j])
                 for j in range(k)) + b
        feats.append(jnp.max(jax.nn.relu(sc), axis=1))
    feat = jnp.concatenate(feats, axis=1).astype(jnp.bfloat16).astype(jnp.float32)
    cls_w = params["cls_w"].astype(jnp.bfloat16).astype(jnp.float32)
    logits = feat @ cls_w.T + params["cls_b"]
    logp = jax.nn.log_softmax(logits, axis=-1)
    loss = -jnp.mean(jnp.take_along_axis(logp, target[:, None], axis=-1))
    return loss, logits


if __name__ == "__main__":
    vocab_size = 100
    embedding_size = 32
    hidden_size = 32          # unused in forward (matches reference module)
    num_classes = 4
    num_filters = 128
    filter_sizes = (3, 4, 5)
    batch, seq_len = 16, 16

    key = jax.random.PRNGKey(0)
    keys = jax.random.split(key, 12)

    params = {"filter_sizes": filter_sizes}
    params["embedding"] = (
        jax.random.normal(keys[0], (vocab_size, embedding_size), jnp.float32) * 0.1)
    for i, k in enumerate(filter_sizes):
        params[f"conv_w_{k}"] = (
            jax.random.normal(keys[1 + i], (k, embedding_size, num_filters),
                              jnp.float32) * 0.05)
        params[f"conv_b_{k}"] = (
            jax.random.normal(keys[4 + i], (num_filters,), jnp.float32) * 0.01)
    params["cls_w"] = (
        jax.random.normal(keys[7], (num_classes, num_filters * len(filter_sizes)),
                          jnp.float32) * 0.05)
    params["cls_b"] = jax.random.normal(keys[8], (num_classes,), jnp.float32) * 0.01

    input_ids = jax.random.randint(keys[9], (batch, seq_len), 0, vocab_size, jnp.int32)
    input_mask = jnp.ones((batch, seq_len), jnp.int32)
    target = jax.random.randint(keys[10], (batch,), 0, num_classes, jnp.int32)

    loss, logits = textcnn_forward(params, input_ids, input_mask, target)
    jax.block_until_ready((loss, logits))

    ref_loss, ref_logits = textcnn_reference(params, input_ids, input_mask, target)
    np.testing.assert_allclose(np.asarray(logits), np.asarray(ref_logits),
                               rtol=2e-2, atol=2e-3)
    np.testing.assert_allclose(np.asarray(loss), np.asarray(ref_loss),
                               rtol=2e-2, atol=2e-3)

    print("KERNEL_OK")
</pallas_src>

<mosaic_0001>
module attributes {stable_mosaic.version = 11 : i64} {
  func.func @_textcnn_fused_kernel(%arg0: i32, %arg1: memref<16xi32, #tpu.memory_space<smem>>, %arg2: memref<256x160xbf16, #tpu.memory_space<vmem>>, %arg3: memref<160x384xbf16, #tpu.memory_space<vmem>>, %arg4: memref<16x384xf32, #tpu.memory_space<vmem>>, %arg5: memref<1x384xf32, #tpu.memory_space<vmem>>, %arg6: memref<384x128xbf16, #tpu.memory_space<vmem>>, %arg7: memref<1x128xf32, #tpu.memory_space<vmem>>, %arg8: memref<16x128xf32, #tpu.memory_space<vmem>>) attributes {dimension_semantics = [#tpu.dimension_semantics<parallel>], iteration_bounds = array<i64: 1>, scalar_prefetch = 1 : i64, scratch_operands = 0 : i64, tpu.core_type = #tpu.core_type<tc>, window_params = [{transform_indices = @transform_0, window_bounds = array<i64: 256, 160>}, {pipeline_mode = #tpu.pipeline_mode<synchronous>, transform_indices = @transform_1, window_bounds = array<i64: 160, 384>}, {pipeline_mode = #tpu.pipeline_mode<synchronous>, transform_indices = @transform_2, window_bounds = array<i64: 16, 384>}, {pipeline_mode = #tpu.pipeline_mode<synchronous>, transform_indices = @transform_3, window_bounds = array<i64: 1, 384>}, {pipeline_mode = #tpu.pipeline_mode<synchronous>, transform_indices = @transform_4, window_bounds = array<i64: 384, 128>}, {pipeline_mode = #tpu.pipeline_mode<synchronous>, transform_indices = @transform_5, window_bounds = array<i64: 1, 128>}, {transform_indices = @transform_6, window_bounds = array<i64: 16, 128>}]} {
    %c0 = arith.constant 0 : index
    %c0_0 = arith.constant 0 : index
    %0 = vector.load %arg2[%c0, %c0_0] : memref<256x160xbf16, #tpu.memory_space<vmem>>, vector<256x160xbf16>
    %c0_1 = arith.constant 0 : index
    %c0_2 = arith.constant 0 : index
    %1 = vector.load %arg3[%c0_1, %c0_2] : memref<160x384xbf16, #tpu.memory_space<vmem>>, vector<160x384xbf16>
    %cst = arith.constant dense<0.000000e+00> : vector<256x384xf32>
    %2 = tpu.matmul %0, %1, %cst {dimension_numbers = #tpu.dot_dimension_numbers<[1], [0], [0], [1], [0, 0, 1, 1], [], []>} : vector<256x160xbf16>, vector<160x384xbf16>, vector<256x384xf32> -> vector<256x384xf32>
    %3 = vector.shape_cast %2 : vector<256x384xf32> to vector<16x16x384xf32>
    %c0_3 = arith.constant 0 : index
    %c0_4 = arith.constant 0 : index
    %4 = vector.load %arg4[%c0_3, %c0_4] : memref<16x384xf32, #tpu.memory_space<vmem>>, vector<16x384xf32>
    %5 = vector.shape_cast %4 : vector<16x384xf32> to vector<1x16x384xf32>
    %6 = vector.broadcast %5 : vector<1x16x384xf32> to vector<16x16x384xf32>
    %7 = arith.addf %3, %6 : vector<16x16x384xf32>
    %cst_5 = arith.constant dense<0xFF800000> : vector<16x384xf32>
    %8 = vector.multi_reduction <maximumf>, %7, %cst_5 [1] : vector<16x16x384xf32> to vector<16x384xf32>
    %c0_6 = arith.constant 0 : index
    %c0_7 = arith.constant 0 : index
    %9 = vector.load %arg5[%c0_6, %c0_7] : memref<1x384xf32, #tpu.memory_space<vmem>>, vector<1x384xf32>
    %10 = vector.broadcast %9 : vector<1x384xf32> to vector<16x384xf32>
    %11 = arith.addf %8, %10 : vector<16x384xf32>
    %cst_8 = arith.constant 0.000000e+00 : f32
    %12 = vector.broadcast %cst_8 : f32 to vector<16x384xf32>
    %13 = arith.maximumf %11, %12 : vector<16x384xf32>
    %14 = arith.truncf %13 : vector<16x384xf32> to vector<16x384xbf16>
    %c0_9 = arith.constant 0 : index
    %c0_10 = arith.constant 0 : index
    %15 = vector.load %arg6[%c0_9, %c0_10] : memref<384x128xbf16, #tpu.memory_space<vmem>>, vector<384x128xbf16>
    %cst_11 = arith.constant dense<0.000000e+00> : vector<16x128xf32>
    %16 = tpu.matmul %14, %15, %cst_11 {dimension_numbers = #tpu.dot_dimension_numbers<[1], [0], [0], [1], [0, 0, 1, 1], [], []>} : vector<16x384xbf16>, vector<384x128xbf16>, vector<16x128xf32> -> vector<16x128xf32>
    %c0_12 = arith.constant 0 : index
    %c0_13 = arith.constant 0 : index
    %17 = vector.load %arg7[%c0_12, %c0_13] : memref<1x128xf32, #tpu.memory_space<vmem>>, vector<1x128xf32>
    %18 = vector.broadcast %17 : vector<1x128xf32> to vector<16x128xf32>
    %19 = arith.addf %16, %18 : vector<16x128xf32>
    %cst_14 = arith.constant dense<0xFF800000> : vector<16xf32>
    %20 = vector.multi_reduction <maximumf>, %19, %cst_14 [1] : vector<16x128xf32> to vector<16xf32>
    %21 = vector.shape_cast %20 : vector<16xf32> to vector<16x1xf32>
    %22 = vector.broadcast %21 : vector<16x1xf32> to vector<16x128xf32>
    %23 = arith.subf %19, %22 : vector<16x128xf32>
    %24 = math.exp %23 : vector<16x128xf32>
    %cst_15 = arith.constant dense<0.000000e+00> : vector<16xf32>
    %25 = vector.multi_reduction <add>, %24, %cst_15 [1] : vector<16x128xf32> to vector<16xf32>
    %26 = vector.shape_cast %25 : vector<16xf32> to vector<16x1xf32>
    %27 = math.log %26 : vector<16x1xf32>
    %28 = arith.addf %21, %27 : vector<16x1xf32>
    %29 = tpu.iota {dimensions = array<i32: 0>} : vector<16x128xi32>
    %30 = tpu.iota {dimensions = array<i32: 1>} : vector<16x128xi32>
    %c16_i32 = arith.constant 16 : i32
    %31 = arith.muli %arg0, %c16_i32 : i32
    %c0_i32 = arith.constant 0 : i32
    %32 = vector.broadcast %c0_i32 : i32 to vector<16x128xi32>
    %c0_i32_16 = arith.constant 0 : i32
    %33 = vector.broadcast %c0_i32_16 : i32 to vector<16x128xi32>
    %34 = arith.cmpi eq, %29, %33 : vector<16x128xi32>
    %c0_i32_17 = arith.constant 0 : i32
    %35 = arith.addi %31, %c0_i32_17 : i32
    %36 = arith.index_cast %35 : i32 to index
    %37 = memref.load %arg1[%36] : memref<16xi32, #tpu.memory_space<smem>>
    %38 = vector.broadcast %37 : i32 to vector<16x128xi32>
    %39 = arith.select %34, %38, %32 : vector<16x128xi1>, vector<16x128xi32>
    %c1_i32 = arith.constant 1 : i32
    %40 = vector.broadcast %c1_i32 : i32 to vector<16x128xi32>
    %41 = arith.cmpi eq, %29, %40 : vector<16x128xi32>
    %c1_i32_18 = arith.constant 1 : i32
    %42 = arith.addi %31, %c1_i32_18 : i32
    %43 = arith.index_cast %42 : i32 to index
    %44 = memref.load %arg1[%43] : memref<16xi32, #tpu.memory_space<smem>>
    %45 = vector.broadcast %44 : i32 to vector<16x128xi32>
    %46 = arith.select %41, %45, %39 : vector<16x128xi1>, vector<16x128xi32>
    %c2_i32 = arith.constant 2 : i32
    %47 = vector.broadcast %c2_i32 : i32 to vector<16x128xi32>
    %48 = arith.cmpi eq, %29, %47 : vector<16x128xi32>
    %c2_i32_19 = arith.constant 2 : i32
    %49 = arith.addi %31, %c2_i32_19 : i32
    %50 = arith.index_cast %49 : i32 to index
    %51 = memref.load %arg1[%50] : memref<16xi32, #tpu.memory_space<smem>>
    %52 = vector.broadcast %51 : i32 to vector<16x128xi32>
    %53 = arith.select %48, %52, %46 : vector<16x128xi1>, vector<16x128xi32>
    %c3_i32 = arith.constant 3 : i32
    %54 = vector.broadcast %c3_i32 : i32 to vector<16x128xi32>
    %55 = arith.cmpi eq, %29, %54 : vector<16x128xi32>
    %c3_i32_20 = arith.constant 3 : i32
    %56 = arith.addi %31, %c3_i32_20 : i32
    %57 = arith.index_cast %56 : i32 to index
    %58 = memref.load %arg1[%57] : memref<16xi32, #tpu.memory_space<smem>>
    %59 = vector.broadcast %58 : i32 to vector<16x128xi32>
    %60 = arith.select %55, %59, %53 : vector<16x128xi1>, vector<16x128xi32>
    %c4_i32 = arith.constant 4 : i32
    %61 = vector.broadcast %c4_i32 : i32 to vector<16x128xi32>
    %62 = arith.cmpi eq, %29, %61 : vector<16x128xi32>
    %c4_i32_21 = arith.constant 4 : i32
    %63 = arith.addi %31, %c4_i32_21 : i32
    %64 = arith.index_cast %63 : i32 to index
    %65 = memref.load %arg1[%64] : memref<16xi32, #tpu.memory_space<smem>>
    %66 = vector.broadcast %65 : i32 to vector<16x128xi32>
    %67 = arith.select %62, %66, %60 : vector<16x128xi1>, vector<16x128xi32>
    %c5_i32 = arith.constant 5 : i32
    %68 = vector.broadcast %c5_i32 : i32 to vector<16x128xi32>
    %69 = arith.cmpi eq, %29, %68 : vector<16x128xi32>
    %c5_i32_22 = arith.constant 5 : i32
    %70 = arith.addi %31, %c5_i32_22 : i32
    %71 = arith.index_cast %70 : i32 to index
    %72 = memref.load %arg1[%71] : memref<16xi32, #tpu.memory_space<smem>>
    %73 = vector.broadcast %72 : i32 to vector<16x128xi32>
    %74 = arith.select %69, %73, %67 : vector<16x128xi1>, vector<16x128xi32>
    %c6_i32 = arith.constant 6 : i32
    %75 = vector.broadcast %c6_i32 : i32 to vector<16x128xi32>
    %76 = arith.cmpi eq, %29, %75 : vector<16x128xi32>
    %c6_i32_23 = arith.constant 6 : i32
    %77 = arith.addi %31, %c6_i32_23 : i32
    %78 = arith.index_cast %77 : i32 to index
    %79 = memref.load %arg1[%78] : memref<16xi32, #tpu.memory_space<smem>>
    %80 = vector.broadcast %79 : i32 to vector<16x128xi32>
    %81 = arith.select %76, %80, %74 : vector<16x128xi1>, vector<16x128xi32>
    %c7_i32 = arith.constant 7 : i32
    %82 = vector.broadcast %c7_i32 : i32 to vector<16x128xi32>
    %83 = arith.cmpi eq, %29, %82 : vector<16x128xi32>
    %c7_i32_24 = arith.constant 7 : i32
    %84 = arith.addi %31, %c7_i32_24 : i32
    %85 = arith.index_cast %84 : i32 to index
    %86 = memref.load %arg1[%85] : memref<16xi32, #tpu.memory_space<smem>>
    %87 = vector.broadcast %86 : i32 to vector<16x128xi32>
    %88 = arith.select %83, %87, %81 : vector<16x128xi1>, vector<16x128xi32>
    %c8_i32 = arith.constant 8 : i32
    %89 = vector.broadcast %c8_i32 : i32 to vector<16x128xi32>
    %90 = arith.cmpi eq, %29, %89 : vector<16x128xi32>
    %c8_i32_25 = arith.constant 8 : i32
    %91 = arith.addi %31, %c8_i32_25 : i32
    %92 = arith.index_cast %91 : i32 to index
    %93 = memref.load %arg1[%92] : memref<16xi32, #tpu.memory_space<smem>>
    %94 = vector.broadcast %93 : i32 to vector<16x128xi32>
    %95 = arith.select %90, %94, %88 : vector<16x128xi1>, vector<16x128xi32>
    %c9_i32 = arith.constant 9 : i32
    %96 = vector.broadcast %c9_i32 : i32 to vector<16x128xi32>
    %97 = arith.cmpi eq, %29, %96 : vector<16x128xi32>
    %c9_i32_26 = arith.constant 9 : i32
    %98 = arith.addi %31, %c9_i32_26 : i32
    %99 = arith.index_cast %98 : i32 to index
    %100 = memref.load %arg1[%99] : memref<16xi32, #tpu.memory_space<smem>>
    %101 = vector.broadcast %100 : i32 to vector<16x128xi32>
    %102 = arith.select %97, %101, %95 : vector<16x128xi1>, vector<16x128xi32>
    %c10_i32 = arith.constant 10 : i32
    %103 = vector.broadcast %c10_i32 : i32 to vector<16x128xi32>
    %104 = arith.cmpi eq, %29, %103 : vector<16x128xi32>
    %c10_i32_27 = arith.constant 10 : i32
    %105 = arith.addi %31, %c10_i32_27 : i32
    %106 = arith.index_cast %105 : i32 to index
    %107 = memref.load %arg1[%106] : memref<16xi32, #tpu.memory_space<smem>>
    %108 = vector.broadcast %107 : i32 to vector<16x128xi32>
    %109 = arith.select %104, %108, %102 : vector<16x128xi1>, vector<16x128xi32>
    %c11_i32 = arith.constant 11 : i32
    %110 = vector.broadcast %c11_i32 : i32 to vector<16x128xi32>
    %111 = arith.cmpi eq, %29, %110 : vector<16x128xi32>
    %c11_i32_28 = arith.constant 11 : i32
    %112 = arith.addi %31, %c11_i32_28 : i32
    %113 = arith.index_cast %112 : i32 to index
    %114 = memref.load %arg1[%113] : memref<16xi32, #tpu.memory_space<smem>>
    %115 = vector.broadcast %114 : i32 to vector<16x128xi32>
    %116 = arith.select %111, %115, %109 : vector<16x128xi1>, vector<16x128xi32>
    %c12_i32 = arith.constant 12 : i32
    %117 = vector.broadcast %c12_i32 : i32 to vector<16x128xi32>
    %118 = arith.cmpi eq, %29, %117 : vector<16x128xi32>
    %c12_i32_29 = arith.constant 12 : i32
    %119 = arith.addi %31, %c12_i32_29 : i32
    %120 = arith.index_cast %119 : i32 to index
    %121 = memref.load %arg1[%120] : memref<16xi32, #tpu.memory_space<smem>>
    %122 = vector.broadcast %121 : i32 to vector<16x128xi32>
    %123 = arith.select %118, %122, %116 : vector<16x128xi1>, vector<16x128xi32>
    %c13_i32 = arith.constant 13 : i32
    %124 = vector.broadcast %c13_i32 : i32 to vector<16x128xi32>
    %125 = arith.cmpi eq, %29, %124 : vector<16x128xi32>
    %c13_i32_30 = arith.constant 13 : i32
    %126 = arith.addi %31, %c13_i32_30 : i32
    %127 = arith.index_cast %126 : i32 to index
    %128 = memref.load %arg1[%127] : memref<16xi32, #tpu.memory_space<smem>>
    %129 = vector.broadcast %128 : i32 to vector<16x128xi32>
    %130 = arith.select %125, %129, %123 : vector<16x128xi1>, vector<16x128xi32>
    %c14_i32 = arith.constant 14 : i32
    %131 = vector.broadcast %c14_i32 : i32 to vector<16x128xi32>
    %132 = arith.cmpi eq, %29, %131 : vector<16x128xi32>
    %c14_i32_31 = arith.constant 14 : i32
    %133 = arith.addi %31, %c14_i32_31 : i32
    %134 = arith.index_cast %133 : i32 to index
    %135 = memref.load %arg1[%134] : memref<16xi32, #tpu.memory_space<smem>>
    %136 = vector.broadcast %135 : i32 to vector<16x128xi32>
    %137 = arith.select %132, %136, %130 : vector<16x128xi1>, vector<16x128xi32>
    %c15_i32 = arith.constant 15 : i32
    %138 = vector.broadcast %c15_i32 : i32 to vector<16x128xi32>
    %139 = arith.cmpi eq, %29, %138 : vector<16x128xi32>
    %c15_i32_32 = arith.constant 15 : i32
    %140 = arith.addi %31, %c15_i32_32 : i32
    %141 = arith.index_cast %140 : i32 to index
    %142 = memref.load %arg1[%141] : memref<16xi32, #tpu.memory_space<smem>>
    %143 = vector.broadcast %142 : i32 to vector<16x128xi32>
    %144 = arith.select %139, %143, %137 : vector<16x128xi1>, vector<16x128xi32>
    %145 = arith.cmpi eq, %30, %144 : vector<16x128xi32>
    %cst_33 = arith.constant 0.000000e+00 : f32
    %146 = vector.broadcast %cst_33 : f32 to vector<16x128xf32>
    %147 = arith.select %145, %19, %146 : vector<16x128xi1>, vector<16x128xf32>
    %cst_34 = arith.constant dense<0.000000e+00> : vector<16xf32>
    %148 = vector.multi_reduction <add>, %147, %cst_34 [1] : vector<16x128xf32> to vector<16xf32>
    %149 = vector.shape_cast %148 : vector<16xf32> to vector<16x1xf32>
    %150 = arith.subf %28, %149 : vector<16x1xf32>
    %c4_i32_35 = arith.constant 4 : i32
    %151 = vector.broadcast %c4_i32_35 : i32 to vector<16x128xi32>
    %152 = arith.cmpi eq, %30, %151 : vector<16x128xi32>
    %153 = vector.shape_cast %150 : vector<16x1xf32> to vector<16x1xf32>
    %154 = vector.broadcast %153 : vector<16x1xf32> to vector<16x128xf32>
    %155 = arith.select %152, %154, %19 : vector<16x128xi1>, vector<16x128xf32>
    %c0_36 = arith.constant 0 : index
    %c0_37 = arith.constant 0 : index
    %156 = vector.load %arg8[%c0_36, %c0_37] : memref<16x128xf32, #tpu.memory_space<vmem>>, vector<16x128xf32>
    tpu.vector_store %arg8[%c0_36, %c0_37], %155 {strides = array<i32>} : memref<16x128xf32, #tpu.memory_space<vmem>>, vector<16x128xf32>,
    return
  }
  func.func @transform_0(%arg0: i32, %arg1: memref<16xi32, #tpu.memory_space<smem>>) -> (i32, i32) {
    %c0_i32 = arith.constant 0 : i32
    %c0_i32_0 = arith.constant 0 : i32
    return %arg0, %c0_i32 : i32, i32
  }
  func.func @transform_1(%arg0: i32, %arg1: memref<16xi32, #tpu.memory_space<smem>>) -> (i32, i32) {
    %c0_i32 = arith.constant 0 : i32
    %c0_i32_0 = arith.constant 0 : i32
    %c0_i32_1 = arith.constant 0 : i32
    return %c0_i32, %c0_i32_0 : i32, i32
  }
  func.func @transform_2(%arg0: i32, %arg1: memref<16xi32, #tpu.memory_space<smem>>) -> (i32, i32) {
    %c0_i32 = arith.constant 0 : i32
    %c0_i32_0 = arith.constant 0 : i32
    %c0_i32_1 = arith.constant 0 : i32
    return %c0_i32, %c0_i32_0 : i32, i32
  }
  func.func @transform_3(%arg0: i32, %arg1: memref<16xi32, #tpu.memory_space<smem>>) -> (i32, i32) {
    %c0_i32 = arith.constant 0 : i32
    %c0_i32_0 = arith.constant 0 : i32
    %c0_i32_1 = arith.constant 0 : i32
    return %c0_i32, %c0_i32_0 : i32, i32
  }
  func.func @transform_4(%arg0: i32, %arg1: memref<16xi32, #tpu.memory_space<smem>>) -> (i32, i32) {
    %c0_i32 = arith.constant 0 : i32
    %c0_i32_0 = arith.constant 0 : i32
    %c0_i32_1 = arith.constant 0 : i32
    return %c0_i32, %c0_i32_0 : i32, i32
  }
  func.func @transform_5(%arg0: i32, %arg1: memref<16xi32, #tpu.memory_space<smem>>) -> (i32, i32) {
    %c0_i32 = arith.constant 0 : i32
    %c0_i32_0 = arith.constant 0 : i32
    %c0_i32_1 = arith.constant 0 : i32
    return %c0_i32, %c0_i32_0 : i32, i32
  }
  func.func @transform_6(%arg0: i32, %arg1: memref<16xi32, #tpu.memory_space<smem>>) -> (i32, i32) {
    %c0_i32 = arith.constant 0 : i32
    %c0_i32_0 = arith.constant 0 : i32
    return %arg0, %c0_i32 : i32, i32
  }
}

</mosaic_0001>

<llo_original>
// kernel: tpu_custom_call.1
$region0: #{tpu_custom_call.1}
  #allocation0 [shape = 'u32[]', space=smem, size = 0x4, offset = 0x4, fixed_abs, tag = 'smem constant byte address 0x4 - core index']
  #allocation1 [shape = 'u32[144,128]{1,0:T(1,128)}', space=vmem, size = 0x12000, scoped, tag = 'internal scratch']
  #allocation2 [shape = 's32[1]{0}', space=sflag, size = 0x4, scoped, tag = 'scoped memory for tpu_custom_call.1']
  #allocation3 [shape = 'u8[512]{0}', space=smem, size = 0x200, scoped, tag = 'prefetched SMEM operand 0']
  %s0 = inlined_call_operand.vmem [shape: s32[16], index: 0, kind: input, shape index: {}]
  %s1 = inlined_call_operand.vmem [shape: bf16[256,160], index: 1, kind: input, shape index: {}]
  %s2 = inlined_call_operand.vmem [shape: bf16[160,384], index: 2, kind: input, shape index: {}]
  %s3 = inlined_call_operand.vmem [shape: f32[16,384], index: 3, kind: input, shape index: {}]
  %s4 = inlined_call_operand.vmem [shape: f32[1,384], index: 4, kind: input, shape index: {}]
  %s5 = inlined_call_operand.hbm [shape: bf16[384,128], index: 5, kind: input, shape index: {}]
  %s6 = inlined_call_operand.vmem [shape: f32[1,128], index: 6, kind: input, shape index: {}]
  %s7 = inlined_call_operand.hbm [shape: f32[16,128], index: 7, kind: output, shape index: {}]
  %s8 = sld [smem:[#allocation0]]
  $region38: #{tpu_custom_call.1} parent=0
    _
  %s10 = ssub.s32 1, %s8
  %s11 = scalar_select 0, %s10, %s8
  %s12 = sshll.u32 %s0, 4
  %s13 = int_to_ptr.vmem [resolvable:$true] %s12
  %15 = dma.vmem_to_smem %s13, 16, [#allocation3], [#allocation2]
  %16 = dma.done [#allocation2], 16
  %17 = sfence
  $region1: #{tpu_custom_call.1} parent=0
    #allocation4 [shape = 'u8[98304]{0}', space=vmem, size = 0x18000, scoped, tag = 'input window, operand 5, single buffered']
    #allocation5 [shape = 's32[1]{0}', space=sflag, size = 0x4, scoped, tag = 'scoped memory for tpu_custom_call.1']
    #allocation6 [shape = 's32[1]{0}', space=sflag, size = 0x4, scoped, tag = 'scoped memory for tpu_custom_call.1']
    #allocation7 [shape = 'u8[8192]{0}', space=vmem, size = 0x2000, scoped, tag = 'output window, operand 0, single buffered']
    %18 = vsyncpa [#allocation5], 0
    %19 = vsyncpa [#allocation6], 0
    // Predicated region
    $region2: #{tpu_custom_call.1} parent=1 // pred_check
      _
    $region3: #{tpu_custom_call.1} parent=1 // pred_check_branch
      %21 = sbr.rel (0) target = $region5
    $region4: #{tpu_custom_call.1} parent=1 // pred_region
      _
    $region5: #{tpu_custom_call.1} parent=1 // pred_fallthru
      _
    // Predicated region
    $region6: #{tpu_custom_call.1} parent=1 // pred_check
      _
    $region7: #{tpu_custom_call.1} parent=1 // pred_check_branch
      %23 = sbr.rel (0) target = $region9
    $region8: #{tpu_custom_call.1} parent=1 // pred_region
      _
    $region9: #{tpu_custom_call.1} parent=1 // pred_fallthru
      _
    // Predicated region
    $region10: #{tpu_custom_call.1} parent=1 // pred_check
      _
    $region11: #{tpu_custom_call.1} parent=1 // pred_check_branch
      %25 = sbr.rel (0) target = $region13
    $region12: #{tpu_custom_call.1} parent=1 // pred_region
      _
    $region13: #{tpu_custom_call.1} parent=1 // pred_fallthru
      _
    // Predicated region
    $region14: #{tpu_custom_call.1} parent=1 // pred_check
      _
    $region15: #{tpu_custom_call.1} parent=1 // pred_check_branch
      %27 = sbr.rel (0) target = $region17
    $region16: #{tpu_custom_call.1} parent=1 // pred_region
      _
    $region17: #{tpu_custom_call.1} parent=1 // pred_fallthru
      _
    // Predicated region
    $region18: #{tpu_custom_call.1} parent=1 // pred_check
      _
    $region19: #{tpu_custom_call.1} parent=1 // pred_check_branch
      %29 = sbr.rel (0) target = $region21
    $region20: #{tpu_custom_call.1} parent=1 // pred_region
      %s31 = ssub.s32 3072, 3072
      %32 = vsyncadd [#allocation5], %s31
      %s33 = sshll.u32 [#allocation4], 4
      %s34 = int_to_ptr.vmem [resolvable:$true] %s33
      %39 = dma.hbm_to_vmem [thread:$0]  %s5, 3072, %s34, [#allocation5], 64, 64, 4
    $region21: #{tpu_custom_call.1} parent=1 // pred_fallthru
      _
    // Predicated region
    $region22: #{tpu_custom_call.1} parent=1 // pred_check
      _
    $region23: #{tpu_custom_call.1} parent=1 // pred_check_branch
      %41 = sbr.rel (0) target = $region25
    $region24: #{tpu_custom_call.1} parent=1 // pred_region
      _
    $region25: #{tpu_custom_call.1} parent=1 // pred_fallthru
      _
    // Predicated region
    $region26: #{tpu_custom_call.1} parent=1 // pred_check
      _
    $region27: #{tpu_custom_call.1} parent=1 // pred_check_branch
      %43 = sbr.rel (0) target = $region29
    $region28: #{tpu_custom_call.1} parent=1 // pred_region
      %44 = dma.done [#allocation5], 3072
    $region29: #{tpu_custom_call.1} parent=1 // pred_fallthru
      _
    %v46 = vld [vmem:[%s1] sm:$0xff]
    %v47 = vld [vmem:[%s1 + $0x8] sm:$0xff]
    %v48 = vld [vmem:[%s1 + $0x10] sm:$0xff]
    %v49 = vld [vmem:[%s1 + $0x18] sm:$0xff]
    %v50 = vld [vmem:[%s1 + $0x20] sm:$0xff]
    %v51 = vld [vmem:[%s1 + $0x28] sm:$0xff]
    %v52 = vld [vmem:[%s1 + $0x30] sm:$0xff]
    %v53 = vld [vmem:[%s1 + $0x38] sm:$0xff]
    %v54 = vld [vmem:[%s1 + $0x40] sm:$0xff]
    %v55 = vld [vmem:[%s1 + $0x48] sm:$0xff]
    %v56 = vld [vmem:[%s1 + $0x50] sm:$0xff]
    %v57 = vld [vmem:[%s1 + $0x58] sm:$0xff]
    %v58 = vld [vmem:[%s1 + $0x60] sm:$0xff]
    %v59 = vld [vmem:[%s1 + $0x68] sm:$0xff]
    %v60 = vld [vmem:[%s1 + $0x70] sm:$0xff]
    %v61 = vld [vmem:[%s1 + $0x78] sm:$0xff]
    %v62 = vld [vmem:[%s1 + $0x80] sm:$0xff]
    %v63 = vld [vmem:[%s1 + $0x88] sm:$0xff]
    %v64 = vld [vmem:[%s1 + $0x90] sm:$0xff]
    %v65 = vld [vmem:[%s1 + $0x98] sm:$0xff]
    %v66 = vld [vmem:[%s1 + $0xa0] sm:$0xff]
    %v67 = vld [vmem:[%s1 + $0xa8] sm:$0xff]
    %v68 = vld [vmem:[%s1 + $0xb0] sm:$0xff]
    %v69 = vld [vmem:[%s1 + $0xb8] sm:$0xff]
    %v70 = vld [vmem:[%s1 + $0xc0] sm:$0xff]
    %v71 = vld [vmem:[%s1 + $0xc8] sm:$0xff]
    %v72 = vld [vmem:[%s1 + $0xd0] sm:$0xff]
    %v73 = vld [vmem:[%s1 + $0xd8] sm:$0xff]
    %v74 = vld [vmem:[%s1 + $0xe0] sm:$0xff]
    %v75 = vld [vmem:[%s1 + $0xe8] sm:$0xff]
    %v76 = vld [vmem:[%s1 + $0xf0] sm:$0xff]
    %v77 = vld [vmem:[%s1 + $0xf8] sm:$0xff]
    %v78 = vld [vmem:[%s2] sm:$0xff]
    %v79 = vld [vmem:[%s2 + $0x8] sm:$0xf]
    %v80 = vld [vmem:[%s2 + $0xc] sm:$0xff]
    %v81 = vld [vmem:[%s2 + $0x14] sm:$0xf]
    %v82 = vld [vmem:[%s2 + $0x18] sm:$0xff]
    %v83 = vld [vmem:[%s2 + $0x20] sm:$0xf]
    %v84 = vld [vmem:[%s2 + $0x24] sm:$0xff]
    %v85 = vld [vmem:[%s2 + $0x2c] sm:$0xf]
    %v86 = vld [vmem:[%s2 + $0x30] sm:$0xff]
    %v87 = vld [vmem:[%s2 + $0x38] sm:$0xf]
    %v88 = vld [vmem:[%s2 + $0x3c] sm:$0xff]
    %v89 = vld [vmem:[%s2 + $0x44] sm:$0xf]
    %v90 = vld [vmem:[%s2 + $0x48] sm:$0xff]
    %v91 = vld [vmem:[%s2 + $0x50] sm:$0xf]
    %v92 = vld [vmem:[%s2 + $0x54] sm:$0xff]
    %v93 = vld [vmem:[%s2 + $0x5c] sm:$0xf]
    %v94 = vld [vmem:[%s2 + $0x60] sm:$0xff]
    %v95 = vld [vmem:[%s2 + $0x68] sm:$0xf]
    %v96 = vld [vmem:[%s2 + $0x6c] sm:$0xff]
    %v97 = vld [vmem:[%s2 + $0x74] sm:$0xf]
    %v98 = vld [vmem:[%s2 + $0x78] sm:$0xff]
    %v99 = vld [vmem:[%s2 + $0x80] sm:$0xf]
    %v100 = vld [vmem:[%s2 + $0x84] sm:$0xff]
    %v101 = vld [vmem:[%s2 + $0x8c] sm:$0xf]
    %v102 = vld [vmem:[%s2 + $0x90] sm:$0xff]
    %v103 = vld [vmem:[%s2 + $0x98] sm:$0xf]
    %v104 = vld [vmem:[%s2 + $0x9c] sm:$0xff]
    %v105 = vld [vmem:[%s2 + $0xa4] sm:$0xf]
    %v106 = vld [vmem:[%s2 + $0xa8] sm:$0xff]
    %v107 = vld [vmem:[%s2 + $0xb0] sm:$0xf]
    %v108 = vld [vmem:[%s2 + $0xb4] sm:$0xff]
    %v109 = vld [vmem:[%s2 + $0xbc] sm:$0xf]
    %v110 = vld [vmem:[%s2 + $0xc0] sm:$0xff]
    %v111 = vld [vmem:[%s2 + $0xc8] sm:$0xf]
    %v112 = vld [vmem:[%s2 + $0xcc] sm:$0xff]
    %v113 = vld [vmem:[%s2 + $0xd4] sm:$0xf]
    %v114 = vld [vmem:[%s2 + $0xd8] sm:$0xff]
    %v115 = vld [vmem:[%s2 + $0xe0] sm:$0xf]
    %v116 = vld [vmem:[%s2 + $0xe4] sm:$0xff]
    %v117 = vld [vmem:[%s2 + $0xec] sm:$0xf]
    %v150 = vunpack.c.l.b16 %v46
    %v151 = vunpack.c.h.b16 %v46
    %v152 = vunpack.c.l.b16 %v47
    %v153 = vunpack.c.h.b16 %v47
    %v154 = vunpack.c.l.b16 %v48
    %v155 = vunpack.c.h.b16 %v48
    %v156 = vunpack.c.l.b16 %v49
    %v157 = vunpack.c.h.b16 %v49
    %v158 = vunpack.c.l.b16 %v50
    %v159 = vunpack.c.h.b16 %v50
    %v160 = vunpack.c.l.b16 %v51
    %v161 = vunpack.c.h.b16 %v51
    %v162 = vunpack.c.l.b16 %v52
    %v163 = vunpack.c.h.b16 %v52
    %v164 = vunpack.c.l.b16 %v53
    %v165 = vunpack.c.h.b16 %v53
    %v166 = vunpack.c.l.b16 %v54
    %v167 = vunpack.c.h.b16 %v54
    %v168 = vunpack.c.l.b16 %v55
    %v169 = vunpack.c.h.b16 %v55
    %v170 = vunpack.c.l.b16 %v56
    %v171 = vunpack.c.h.b16 %v56
    %v172 = vunpack.c.l.b16 %v57
    %v173 = vunpack.c.h.b16 %v57
    %v174 = vunpack.c.l.b16 %v58
    %v175 = vunpack.c.h.b16 %v58
    %v176 = vunpack.c.l.b16 %v59
    %v177 = vunpack.c.h.b16 %v59
    %v178 = vunpack.c.l.b16 %v60
    %v179 = vunpack.c.h.b16 %v60
    %v180 = vunpack.c.l.b16 %v61
    %v181 = vunpack.c.h.b16 %v61
    %v182 = vunpack.c.l.b16 %v62
    %v183 = vunpack.c.h.b16 %v62
    %v184 = vunpack.c.l.b16 %v63
    %v185 = vunpack.c.h.b16 %v63
    %v186 = vunpack.c.l.b16 %v64
    %v187 = vunpack.c.h.b16 %v64
    %v188 = vunpack.c.l.b16 %v65
    %v189 = vunpack.c.h.b16 %v65
    %v190 = vunpack.c.l.b16 %v66
    %v191 = vunpack.c.h.b16 %v66
    %v192 = vunpack.c.l.b16 %v67
    %v193 = vunpack.c.h.b16 %v67
    %v194 = vunpack.c.l.b16 %v68
    %v195 = vunpack.c.h.b16 %v68
    %v196 = vunpack.c.l.b16 %v69
    %v197 = vunpack.c.h.b16 %v69
    %v198 = vunpack.c.l.b16 %v70
    %v199 = vunpack.c.h.b16 %v70
    %v200 = vunpack.c.l.b16 %v71
    %v201 = vunpack.c.h.b16 %v71
    %v202 = vunpack.c.l.b16 %v72
    %v203 = vunpack.c.h.b16 %v72
    %v204 = vunpack.c.l.b16 %v73
    %v205 = vunpack.c.h.b16 %v73
    %v206 = vunpack.c.l.b16 %v74
    %v207 = vunpack.c.h.b16 %v74
    %v208 = vunpack.c.l.b16 %v75
    %v209 = vunpack.c.h.b16 %v75
    %v210 = vunpack.c.l.b16 %v76
    %v211 = vunpack.c.h.b16 %v76
    %v212 = vunpack.c.l.b16 %v77
    %v213 = vunpack.c.h.b16 %v77
    %v214 = vpack.c.b16 %v152, %v150
    %v215 = vpack.c.b16 %v153, %v151
    %v216 = vpack.c.b16 %v156, %v154
    %v217 = vpack.c.b16 %v157, %v155
    %v218 = vpack.c.b16 %v160, %v158
    %v219 = vpack.c.b16 %v161, %v159
    %v220 = vpack.c.b16 %v164, %v162
    %v221 = vpack.c.b16 %v165, %v163
    %v222 = vpack.c.b16 %v168, %v166
    %v223 = vpack.c.b16 %v169, %v167
    %v224 = vpack.c.b16 %v172, %v170
    %v225 = vpack.c.b16 %v173, %v171
    %v226 = vpack.c.b16 %v176, %v174
    %v227 = vpack.c.b16 %v177, %v175
    %v228 = vpack.c.b16 %v180, %v178
    %v229 = vpack.c.b16 %v181, %v179
    %v230 = vpack.c.b16 %v184, %v182
    %v231 = vpack.c.b16 %v185, %v183
    %v232 = vpack.c.b16 %v188, %v186
    %v233 = vpack.c.b16 %v189, %v187
    %v234 = vpack.c.b16 %v192, %v190
    %v235 = vpack.c.b16 %v193, %v191
    %v236 = vpack.c.b16 %v196, %v194
    %v237 = vpack.c.b16 %v197, %v195
    %v238 = vpack.c.b16 %v200, %v198
    %v239 = vpack.c.b16 %v201, %v199
    %v240 = vpack.c.b16 %v204, %v202
    %v241 = vpack.c.b16 %v205, %v203
    %v242 = vpack.c.b16 %v208, %v206
    %v243 = vpack.c.b16 %v209, %v207
    %v244 = vpack.c.b16 %v212, %v210
    %v245 = vpack.c.b16 %v213, %v211
    %v302 = vunpack.c.l.b16 %v78
    %v303 = vunpack.c.h.b16 %v78
    %v304 = vunpack.c.l.b16 %v79
    %v305 = vunpack.c.l.b16 %v80
    %v306 = vunpack.c.h.b16 %v80
    %v307 = vunpack.c.l.b16 %v81
    %v308 = vunpack.c.l.b16 %v82
    %v309 = vunpack.c.h.b16 %v82
    %v310 = vunpack.c.l.b16 %v83
    %v311 = vunpack.c.l.b16 %v84
    %v312 = vunpack.c.h.b16 %v84
    %v313 = vunpack.c.l.b16 %v85
    %v314 = vunpack.c.l.b16 %v86
    %v315 = vunpack.c.h.b16 %v86
    %v316 = vunpack.c.l.b16 %v87
    %v317 = vunpack.c.l.b16 %v88
    %v318 = vunpack.c.h.b16 %v88
    %v319 = vunpack.c.l.b16 %v89
    %v320 = vunpack.c.l.b16 %v90
    %v321 = vunpack.c.h.b16 %v90
    %v322 = vunpack.c.l.b16 %v91
    %v323 = vunpack.c.l.b16 %v92
    %v324 = vunpack.c.h.b16 %v92
    %v325 = vunpack.c.l.b16 %v93
    %v326 = vunpack.c.l.b16 %v94
    %v327 = vunpack.c.h.b16 %v94
    %v328 = vunpack.c.l.b16 %v95
    %v329 = vunpack.c.l.b16 %v96
    %v330 = vunpack.c.h.b16 %v96
    %v331 = vunpack.c.l.b16 %v97
    %v332 = vunpack.c.l.b16 %v98
    %v333 = vunpack.c.h.b16 %v98
    %v334 = vunpack.c.l.b16 %v99
    %v335 = vunpack.c.l.b16 %v100
    %v336 = vunpack.c.h.b16 %v100
    %v337 = vunpack.c.l.b16 %v101
    %v338 = vunpack.c.l.b16 %v102
    %v339 = vunpack.c.h.b16 %v102
    %v340 = vunpack.c.l.b16 %v103
    %v341 = vunpack.c.l.b16 %v104
    %v342 = vunpack.c.h.b16 %v104
    %v343 = vunpack.c.l.b16 %v105
    %v344 = vunpack.c.l.b16 %v106
    %v345 = vunpack.c.h.b16 %v106
    %v346 = vunpack.c.l.b16 %v107
    %v347 = vunpack.c.l.b16 %v108
    %v348 = vunpack.c.h.b16 %v108
    %v349 = vunpack.c.l.b16 %v109
    %v350 = vunpack.c.l.b16 %v110
    %v351 = vunpack.c.h.b16 %v110
    %v352 = vunpack.c.l.b16 %v111
    %v353 = vunpack.c.l.b16 %v112
    %v354 = vunpack.c.h.b16 %v112
    %v355 = vunpack.c.l.b16 %v113
    %v356 = vunpack.c.l.b16 %v114
    %v357 = vunpack.c.h.b16 %v114
    %v358 = vunpack.c.l.b16 %v115
    %v359 = vunpack.c.l.b16 %v116
    %v360 = vunpack.c.h.b16 %v116
    %v361 = vunpack.c.l.b16 %v117
    %v362 = vpack.c.b16 %v305, %v302
    %v363 = vpack.c.b16 %v306, %v303
    %v364 = vpack.c.b16 %v307, %v304
    %v365 = vpack.c.b16 %v311, %v308
    %v366 = vpack.c.b16 %v312, %v309
    %v367 = vpack.c.b16 %v313, %v310
    %v368 = vpack.c.b16 %v317, %v314
    %v369 = vpack.c.b16 %v318, %v315
    %v370 = vpack.c.b16 %v319, %v316
    %v371 = vpack.c.b16 %v323, %v320
    %v372 = vpack.c.b16 %v324, %v321
    %v373 = vpack.c.b16 %v325, %v322
    %v374 = vpack.c.b16 %v329, %v326
    %v375 = vpack.c.b16 %v330, %v327
    %v376 = vpack.c.b16 %v331, %v328
    %v377 = vpack.c.b16 %v335, %v332
    %v378 = vpack.c.b16 %v336, %v333
    %v379 = vpack.c.b16 %v337, %v334
    %v380 = vpack.c.b16 %v341, %v338
    %v381 = vpack.c.b16 %v342, %v339
    %v382 = vpack.c.b16 %v343, %v340
    %v383 = vpack.c.b16 %v347, %v344
    %v384 = vpack.c.b16 %v348, %v345
    %v385 = vpack.c.b16 %v349, %v346
    %v386 = vpack.c.b16 %v353, %v350
    %v387 = vpack.c.b16 %v354, %v351
    %v388 = vpack.c.b16 %v355, %v352
    %v389 = vpack.c.b16 %v359, %v356
    %v390 = vpack.c.b16 %v360, %v357
    %v391 = vpack.c.b16 %v361, %v358
    %vm422 = vcmask 261120
    %v424 = vsel %vm422, %v215, 0
    %v427 = vsel %vm422, %v217, 0
    %v430 = vsel %vm422, %v219, 0
    %v433 = vsel %vm422, %v221, 0
    %v436 = vsel %vm422, %v223, 0
    %v439 = vsel %vm422, %v225, 0
    %v442 = vsel %vm422, %v227, 0
    %v445 = vsel %vm422, %v229, 0
    %v448 = vsel %vm422, %v231, 0
    %v451 = vsel %vm422, %v233, 0
    %v454 = vsel %vm422, %v235, 0
    %v457 = vsel %vm422, %v237, 0
    %v460 = vsel %vm422, %v239, 0
    %v463 = vsel %vm422, %v241, 0
    %v466 = vsel %vm422, %v243, 0
    %v469 = vsel %vm422, %v245, 0
    %471 = vmatprep.subr.bf16.mxu0 %v363
    %472 = vmatpush1.bf16.msra.mxu0 %v362
    %473 = vmatprep.subr.bf16.mxu0 %v366
    %474 = vmatpush1.bf16.msra.mxu0 %v365
    %475 = vmatprep.subr.bf16.mxu0 %v369
    %476 = vmatpush1.bf16.msra.mxu0 %v368
    %477 = vmatprep.subr.bf16.mxu0 %v372
    %478 = vmatpush1.bf16.msra.mxu0 %v371
    %479 = vmatprep.subr.bf16.mxu0 %v375
    %480 = vmatpush1.bf16.msra.mxu0 %v374
    %481 = vmatprep.subr.bf16.mxu0 %v378
    %482 = vmatpush1.bf16.msra.mxu0 %v377
    %483 = vmatprep.subr.bf16.mxu0 %v381
    %484 = vmatpush1.bf16.msra.mxu0 %v380
    %485 = vmatprep.subr.bf16.mxu0 %v384
    %486 = vmatpush1.bf16.msra.mxu0 %v383
    %487 = vmatprep.subr.bf16.mxu0 %v387
    %488 = vmatpush1.bf16.msra.mxu0 %v386
    %489 = vmatprep.subr.bf16.mxu0 %v390
    %490 = vmatpush1.bf16.msra.mxu0 %v389
    %491 = vmatprep.subr.bf16.mxu0 0
    %492 = vmatpush1.bf16.msra.mxu0 0
    %493 = vmatprep.subr.bf16.mxu0 0
    %494 = vmatpush1.bf16.msra.mxu0 0
    %495 = vmatprep.subr.bf16.mxu0 0
    %496 = vmatpush1.bf16.msra.mxu0 0
    %497 = vmatprep.subr.bf16.mxu0 0
    %498 = vmatpush1.bf16.msra.mxu0 0
    %499 = vmatprep.subr.bf16.mxu0 0
    %500 = vmatpush1.bf16.msra.mxu0 0
    %501 = vmatprep.subr.bf16.mxu0 0
    %502 = vmatpush1.bf16.msra.mxu0 0
    %503 = vmatprep.mubr.bf16.mxu0 %v424
    %504 = vmatmul.mubr.bf16.gmra.mrb[0].mxu0 %v214
    %v505 = vpop.f32.mrb[0].mxu0
    %v506 = vadd.f32 0.0, %v505
    %v507 = vpop.f32.mrb[0].mxu0
    %v508 = vadd.f32 0.0, %v507
    %v509 = vpop.f32.mrb[0].mxu0
    %v510 = vadd.f32 0.0, %v509
    %v511 = vpop.f32.mrb[0].mxu0
    %v512 = vadd.f32 0.0, %v511
    %513 = vmatprep.mubr.bf16.mxu0 %v427
    %514 = vmatmul.mubr.bf16.gmra.mrb[0].mxu0 %v216
    %v515 = vpop.f32.mrb[0].mxu0
    %v516 = vadd.f32 0.0, %v515
    %v517 = vpop.f32.mrb[0].mxu0
    %v518 = vadd.f32 0.0, %v517
    %v519 = vpop.f32.mrb[0].mxu0
    %v520 = vadd.f32 0.0, %v519
    %v521 = vpop.f32.mrb[0].mxu0
    %v522 = vadd.f32 0.0, %v521
    %523 = vmatprep.mubr.bf16.mxu0 %v430
    %524 = vmatmul.mubr.bf16.gmra.mrb[0].mxu0 %v218
    %v525 = vpop.f32.mrb[0].mxu0
    %v526 = vadd.f32 0.0, %v525
    %v527 = vpop.f32.mrb[0].mxu0
    %v528 = vadd.f32 0.0, %v527
    %v529 = vpop.f32.mrb[0].mxu0
    %v530 = vadd.f32 0.0, %v529
    %v531 = vpop.f32.mrb[0].mxu0
    %v532 = vadd.f32 0.0, %v531
    %533 = vmatprep.mubr.bf16.mxu0 %v433
    %534 = vmatmul.mubr.bf16.gmra.mrb[0].mxu0 %v220
    %v535 = vpop.f32.mrb[0].mxu0
    %v536 = vadd.f32 0.0, %v535
    %v537 = vpop.f32.mrb[0].mxu0
    %v538 = vadd.f32 0.0, %v537
    %v539 = vpop.f32.mrb[0].mxu0
    %v540 = vadd.f32 0.0, %v539
    %v541 = vpop.f32.mrb[0].mxu0
    %v542 = vadd.f32 0.0, %v541
    %543 = vmatprep.mubr.bf16.mxu0 %v436
    %544 = vmatmul.mubr.bf16.gmra.mrb[0].mxu0 %v222
    %v545 = vpop.f32.mrb[0].mxu0
    %v546 = vadd.f32 0.0, %v545
    %v547 = vpop.f32.mrb[0].mxu0
    %v548 = vadd.f32 0.0, %v547
    %v549 = vpop.f32.mrb[0].mxu0
    %v550 = vadd.f32 0.0, %v549
    %v551 = vpop.f32.mrb[0].mxu0
    %v552 = vadd.f32 0.0, %v551
    %553 = vmatprep.mubr.bf16.mxu0 %v439
    %554 = vmatmul.mubr.bf16.gmra.mrb[0].mxu0 %v224
    %v555 = vpop.f32.mrb[0].mxu0
    %v556 = vadd.f32 0.0, %v555
    %v557 = vpop.f32.mrb[0].mxu0
    %v558 = vadd.f32 0.0, %v557
    %v559 = vpop.f32.mrb[0].mxu0
    %v560 = vadd.f32 0.0, %v559
    %v561 = vpop.f32.mrb[0].mxu0
    %v562 = vadd.f32 0.0, %v561
    %563 = vmatprep.mubr.bf16.mxu0 %v442
    %564 = vmatmul.mubr.bf16.gmra.mrb[0].mxu0 %v226
    %v565 = vpop.f32.mrb[0].mxu0
    %v566 = vadd.f32 0.0, %v565
    %v567 = vpop.f32.mrb[0].mxu0
    %v568 = vadd.f32 0.0, %v567
    %v569 = vpop.f32.mrb[0].mxu0
    %v570 = vadd.f32 0.0, %v569
    %v571 = vpop.f32.mrb[0].mxu0
    %v572 = vadd.f32 0.0, %v571
    %573 = vmatprep.mubr.bf16.mxu0 %v445
    %574 = vmatmul.mubr.bf16.gmra.mrb[0].mxu0 %v228
    %v575 = vpop.f32.mrb[0].mxu0
    %v576 = vadd.f32 0.0, %v575
    %v577 = vpop.f32.mrb[0].mxu0
    %v578 = vadd.f32 0.0, %v577
    %v579 = vpop.f32.mrb[0].mxu0
    %v580 = vadd.f32 0.0, %v579
    %v581 = vpop.f32.mrb[0].mxu0
    %v582 = vadd.f32 0.0, %v581
    %583 = vmatprep.mubr.bf16.mxu0 %v448
    %584 = vmatmul.mubr.bf16.gmra.mrb[0].mxu0 %v230
    %v585 = vpop.f32.mrb[0].mxu0
    %v586 = vadd.f32 0.0, %v585
    %v587 = vpop.f32.mrb[0].mxu0
    %v588 = vadd.f32 0.0, %v587
    %v589 = vpop.f32.mrb[0].mxu0
    %v590 = vadd.f32 0.0, %v589
    %v591 = vpop.f32.mrb[0].mxu0
    %v592 = vadd.f32 0.0, %v591
    %593 = vmatprep.mubr.bf16.mxu0 %v451
    %594 = vmatmul.mubr.bf16.gmra.mrb[0].mxu0 %v232
    %v595 = vpop.f32.mrb[0].mxu0
    %v596 = vadd.f32 0.0, %v595
    %v597 = vpop.f32.mrb[0].mxu0
    %v598 = vadd.f32 0.0, %v597
    %v599 = vpop.f32.mrb[0].mxu0
    %v600 = vadd.f32 0.0, %v599
    %v601 = vpop.f32.mrb[0].mxu0
    %v602 = vadd.f32 0.0, %v601
    %603 = vmatprep.mubr.bf16.mxu0 %v454
    %604 = vmatmul.mubr.bf16.gmra.mrb[0].mxu0 %v234
    %v605 = vpop.f32.mrb[0].mxu0
    %v606 = vadd.f32 0.0, %v605
    %v607 = vpop.f32.mrb[0].mxu0
    %v608 = vadd.f32 0.0, %v607
    %v609 = vpop.f32.mrb[0].mxu0
    %v610 = vadd.f32 0.0, %v609
    %v611 = vpop.f32.mrb[0].mxu0
    %v612 = vadd.f32 0.0, %v611
    %613 = vmatprep.mubr.bf16.mxu0 %v457
    %614 = vmatmul.mubr.bf16.gmra.mrb[0].mxu0 %v236
    %v615 = vpop.f32.mrb[0].mxu0
    %v616 = vadd.f32 0.0, %v615
    %v617 = vpop.f32.mrb[0].mxu0
    %v618 = vadd.f32 0.0, %v617
    %v619 = vpop.f32.mrb[0].mxu0
    %v620 = vadd.f32 0.0, %v619
    %v621 = vpop.f32.mrb[0].mxu0
    %v622 = vadd.f32 0.0, %v621
    %623 = vmatprep.mubr.bf16.mxu0 %v460
    %624 = vmatmul.mubr.bf16.gmra.mrb[0].mxu0 %v238
    %v625 = vpop.f32.mrb[0].mxu0
    %v626 = vadd.f32 0.0, %v625
    %v627 = vpop.f32.mrb[0].mxu0
    %v628 = vadd.f32 0.0, %v627
    %v629 = vpop.f32.mrb[0].mxu0
    %v630 = vadd.f32 0.0, %v629
    %v631 = vpop.f32.mrb[0].mxu0
    %v632 = vadd.f32 0.0, %v631
    %633 = vmatprep.mubr.bf16.mxu0 %v463
    %634 = vmatmul.mubr.bf16.gmra.mrb[0].mxu0 %v240
    %v635 = vpop.f32.mrb[0].mxu0
    %v636 = vadd.f32 0.0, %v635
    %v637 = vpop.f32.mrb[0].mxu0
    %v638 = vadd.f32 0.0, %v637
    %v639 = vpop.f32.mrb[0].mxu0
    %v640 = vadd.f32 0.0, %v639
    %v641 = vpop.f32.mrb[0].mxu0
    %v642 = vadd.f32 0.0, %v641
    %643 = vmatprep.mubr.bf16.mxu0 %v466
    %644 = vmatmul.mubr.bf16.gmra.mrb[0].mxu0 %v242
    %v645 = vpop.f32.mrb[0].mxu0
    %v646 = vadd.f32 0.0, %v645
    %v647 = vpop.f32.mrb[0].mxu0
    %v648 = vadd.f32 0.0, %v647
    %v649 = vpop.f32.mrb[0].mxu0
    %v650 = vadd.f32 0.0, %v649
    %v651 = vpop.f32.mrb[0].mxu0
    %v652 = vadd.f32 0.0, %v651
    %653 = vmatprep.mubr.bf16.mxu0 %v469
    %654 = vmatmul.mubr.bf16.gmra.mrb[0].mxu0 %v244
    %v655 = vpop.f32.mrb[0].mxu0
    %v656 = vadd.f32 0.0, %v655
    %v657 = vpop.f32.mrb[0].mxu0
    %v658 = vadd.f32 0.0, %v657
    %v659 = vpop.f32.mrb[0].mxu0
    %v660 = vadd.f32 0.0, %v659
    %v661 = vpop.f32.mrb[0].mxu0
    %v662 = vadd.f32 0.0, %v661
    %663 = vdwg.mxu0
    %664 = vmatprep.subr.bf16.mxu0 0
    %665 = vmatpush1.bf16.msra.mxu0 %v364
    %666 = vmatprep.subr.bf16.mxu0 0
    %667 = vmatpush1.bf16.msra.mxu0 %v367
    %668 = vmatprep.subr.bf16.mxu0 0
    %669 = vmatpush1.bf16.msra.mxu0 %v370
    %670 = vmatprep.subr.bf16.mxu0 0
    %671 = vmatpush1.bf16.msra.mxu0 %v373
    %672 = vmatprep.subr.bf16.mxu0 0
    %673 = vmatpush1.bf16.msra.mxu0 %v376
    %674 = vmatprep.subr.bf16.mxu0 0
    %675 = vmatpush1.bf16.msra.mxu0 %v379
    %676 = vmatprep.subr.bf16.mxu0 0
    %677 = vmatpush1.bf16.msra.mxu0 %v382
    %678 = vmatprep.subr.bf16.mxu0 0
    %679 = vmatpush1.bf16.msra.mxu0 %v385
    %680 = vmatprep.subr.bf16.mxu0 0
    %681 = vmatpush1.bf16.msra.mxu0 %v388
    %682 = vmatprep.subr.bf16.mxu0 0
    %683 = vmatpush1.bf16.msra.mxu0 %v391
    %684 = vmatprep.subr.bf16.mxu0 0
    %685 = vmatpush1.bf16.msra.mxu0 0
    %686 = vmatprep.subr.bf16.mxu0 0
    %687 = vmatpush1.bf16.msra.mxu0 0
    %688 = vmatprep.subr.bf16.mxu0 0
    %689 = vmatpush1.bf16.msra.mxu0 0
    %690 = vmatprep.subr.bf16.mxu0 0
    %691 = vmatpush1.bf16.msra.mxu0 0
    %692 = vmatprep.subr.bf16.mxu0 0
    %693 = vmatpush1.bf16.msra.mxu0 0
    %694 = vmatprep.subr.bf16.mxu0 0
    %695 = vmatpush1.bf16.msra.mxu0 0
    %696 = vmatprep.mubr.bf16.mxu0 %v424
    %697 = vmatmul.mubr.bf16.gmra.mrb[0].mxu0 %v214
    %v698 = vpop.f32.mrb[0].mxu0
    %v699 = vadd.f32 0.0, %v698
    %v700 = vpop.f32.mrb[0].mxu0
    %v701 = vpop.f32.mrb[0].mxu0
    %v702 = vadd.f32 0.0, %v701
    %v703 = vpop.f32.mrb[0].mxu0
    %704 = vmatprep.mubr.bf16.mxu0 %v427
    %705 = vmatmul.mubr.bf16.gmra.mrb[0].mxu0 %v216
    %v706 = vpop.f32.mrb[0].mxu0
    %v707 = vadd.f32 0.0, %v706
    %v708 = vpop.f32.mrb[0].mxu0
    %v709 = vpop.f32.mrb[0].mxu0
    %v710 = vadd.f32 0.0, %v709
    %v711 = vpop.f32.mrb[0].mxu0
    %712 = vmatprep.mubr.bf16.mxu0 %v430
    %713 = vmatmul.mubr.bf16.gmra.mrb[0].mxu0 %v218
    %v714 = vpop.f32.mrb[0].mxu0
    %v715 = vadd.f32 0.0, %v714
    %v716 = vpop.f32.mrb[0].mxu0
    %v717 = vpop.f32.mrb[0].mxu0
    %v718 = vadd.f32 0.0, %v717
    %v719 = vpop.f32.mrb[0].mxu0
    %720 = vmatprep.mubr.bf16.mxu0 %v433
    %721 = vmatmul.mubr.bf16.gmra.mrb[0].mxu0 %v220
    %v722 = vpop.f32.mrb[0].mxu0
    %v723 = vadd.f32 0.0, %v722
    %v724 = vpop.f32.mrb[0].mxu0
    %v725 = vpop.f32.mrb[0].mxu0
    %v726 = vadd.f32 0.0, %v725
    %v727 = vpop.f32.mrb[0].mxu0
    %728 = vmatprep.mubr.bf16.mxu0 %v436
    %729 = vmatmul.mubr.bf16.gmra.mrb[0].mxu0 %v222
    %v730 = vpop.f32.mrb[0].mxu0
    %v731 = vadd.f32 0.0, %v730
    %v732 = vpop.f32.mrb[0].mxu0
    %v733 = vpop.f32.mrb[0].mxu0
    %v734 = vadd.f32 0.0, %v733
    %v735 = vpop.f32.mrb[0].mxu0
    %736 = vmatprep.mubr.bf16.mxu0 %v439
    %737 = vmatmul.mubr.bf16.gmra.mrb[0].mxu0 %v224
    %v738 = vpop.f32.mrb[0].mxu0
    %v739 = vadd.f32 0.0, %v738
    %v740 = vpop.f32.mrb[0].mxu0
    %v741 = vpop.f32.mrb[0].mxu0
    %v742 = vadd.f32 0.0, %v741
    %v743 = vpop.f32.mrb[0].mxu0
    %744 = vmatprep.mubr.bf16.mxu0 %v442
    %745 = vmatmul.mubr.bf16.gmra.mrb[0].mxu0 %v226
    %v746 = vpop.f32.mrb[0].mxu0
    %v747 = vadd.f32 0.0, %v746
    %v748 = vpop.f32.mrb[0].mxu0
    %v749 = vpop.f32.mrb[0].mxu0
    %v750 = vadd.f32 0.0, %v749
    %v751 = vpop.f32.mrb[0].mxu0
    %752 = vmatprep.mubr.bf16.mxu0 %v445
    %753 = vmatmul.mubr.bf16.gmra.mrb[0].mxu0 %v228
    %v754 = vpop.f32.mrb[0].mxu0
    %v755 = vadd.f32 0.0, %v754
    %v756 = vpop.f32.mrb[0].mxu0
    %v757 = vpop.f32.mrb[0].mxu0
    %v758 = vadd.f32 0.0, %v757
    %v759 = vpop.f32.mrb[0].mxu0
    %760 = vmatprep.mubr.bf16.mxu0 %v448
    %761 = vmatmul.mubr.bf16.gmra.mrb[0].mxu0 %v230
    %v762 = vpop.f32.mrb[0].mxu0
    %v763 = vadd.f32 0.0, %v762
    %v764 = vpop.f32.mrb[0].mxu0
    %v765 = vpop.f32.mrb[0].mxu0
    %v766 = vadd.f32 0.0, %v765
    %v767 = vpop.f32.mrb[0].mxu0
    %768 = vmatprep.mubr.bf16.mxu0 %v451
    %769 = vmatmul.mubr.bf16.gmra.mrb[0].mxu0 %v232
    %v770 = vpop.f32.mrb[0].mxu0
    %v771 = vadd.f32 0.0, %v770
    %v772 = vpop.f32.mrb[0].mxu0
    %v773 = vpop.f32.mrb[0].mxu0
    %v774 = vadd.f32 0.0, %v773
    %v775 = vpop.f32.mrb[0].mxu0
    %776 = vmatprep.mubr.bf16.mxu0 %v454
    %777 = vmatmul.mubr.bf16.gmra.mrb[0].mxu0 %v234
    %v778 = vpop.f32.mrb[0].mxu0
    %v779 = vadd.f32 0.0, %v778
    %v780 = vpop.f32.mrb[0].mxu0
    %v781 = vpop.f32.mrb[0].mxu0
    %v782 = vadd.f32 0.0, %v781
    %v783 = vpop.f32.mrb[0].mxu0
    %784 = vmatprep.mubr.bf16.mxu0 %v457
    %785 = vmatmul.mubr.bf16.gmra.mrb[0].mxu0 %v236
    %v786 = vpop.f32.mrb[0].mxu0
    %v787 = vadd.f32 0.0, %v786
    %v788 = vpop.f32.mrb[0].mxu0
    %v789 = vpop.f32.mrb[0].mxu0
    %v790 = vadd.f32 0.0, %v789
    %v791 = vpop.f32.mrb[0].mxu0
    %792 = vmatprep.mubr.bf16.mxu0 %v460
    %793 = vmatmul.mubr.bf16.gmra.mrb[0].mxu0 %v238
    %v794 = vpop.f32.mrb[0].mxu0
    %v795 = vadd.f32 0.0, %v794
    %v796 = vpop.f32.mrb[0].mxu0
    %v797 = vpop.f32.mrb[0].mxu0
    %v798 = vadd.f32 0.0, %v797
    %v799 = vpop.f32.mrb[0].mxu0
    %800 = vmatprep.mubr.bf16.mxu0 %v463
    %801 = vmatmul.mubr.bf16.gmra.mrb[0].mxu0 %v240
    %v802 = vpop.f32.mrb[0].mxu0
    %v803 = vadd.f32 0.0, %v802
    %v804 = vpop.f32.mrb[0].mxu0
    %v805 = vpop.f32.mrb[0].mxu0
    %v806 = vadd.f32 0.0, %v805
    %v807 = vpop.f32.mrb[0].mxu0
    %808 = vmatprep.mubr.bf16.mxu0 %v466
    %809 = vmatmul.mubr.bf16.gmra.mrb[0].mxu0 %v242
    %v810 = vpop.f32.mrb[0].mxu0
    %v811 = vadd.f32 0.0, %v810
    %v812 = vpop.f32.mrb[0].mxu0
    %v813 = vpop.f32.mrb[0].mxu0
    %v814 = vadd.f32 0.0, %v813
    %v815 = vpop.f32.mrb[0].mxu0
    %816 = vmatprep.mubr.bf16.mxu0 %v469
    %817 = vmatmul.mubr.bf16.gmra.mrb[0].mxu0 %v244
    %v818 = vpop.f32.mrb[0].mxu0
    %v819 = vadd.f32 0.0, %v818
    %v820 = vpop.f32.mrb[0].mxu0
    %v821 = vpop.f32.mrb[0].mxu0
    %v822 = vadd.f32 0.0, %v821
    %v823 = vpop.f32.mrb[0].mxu0
    %824 = vdwg.mxu0
    %v825 = vld [vmem:[%s3] sm:$0xff]
    %v826 = vld [vmem:[%s3 + $0x8] sm:$0xff]
    %v827 = vld [vmem:[%s3 + $0x10] sm:$0xff]
    %v828 = vld [vmem:[%s3 + $0x18] sm:$0xff]
    %v829 = vld [vmem:[%s3 + $0x20] sm:$0xff]
    %v830 = vld [vmem:[%s3 + $0x28] sm:$0xff]
    %v831 = vadd.f32 %v506, %v825
    %v832 = vadd.f32 %v508, %v826
    %v833 = vadd.f32 %v699, %v827
    %v834 = vadd.f32 %v510, %v828
    %v835 = vadd.f32 %v512, %v829
    %v836 = vadd.f32 %v702, %v830
    %v837 = vadd.f32 %v516, %v825
    %v838 = vadd.f32 %v518, %v826
    %v839 = vadd.f32 %v707, %v827
    %v840 = vadd.f32 %v520, %v828
    %v841 = vadd.f32 %v522, %v829
    %v842 = vadd.f32 %v710, %v830
    %v843 = vadd.f32 %v526, %v825
    %v844 = vadd.f32 %v528, %v826
    %v845 = vadd.f32 %v715, %v827
    %v846 = vadd.f32 %v530, %v828
    %v847 = vadd.f32 %v532, %v829
    %v848 = vadd.f32 %v718, %v830
    %v849 = vadd.f32 %v536, %v825
    %v850 = vadd.f32 %v538, %v826
    %v851 = vadd.f32 %v723, %v827
    %v852 = vadd.f32 %v540, %v828
    %v853 = vadd.f32 %v542, %v829
    %v854 = vadd.f32 %v726, %v830
    %v855 = vadd.f32 %v546, %v825
    %v856 = vadd.f32 %v548, %v826
    %v857 = vadd.f32 %v731, %v827
    %v858 = vadd.f32 %v550, %v828
    %v859 = vadd.f32 %v552, %v829
    %v860 = vadd.f32 %v734, %v830
    %v861 = vadd.f32 %v556, %v825
    %v862 = vadd.f32 %v558, %v826
    %v863 = vadd.f32 %v739, %v827
    %v864 = vadd.f32 %v560, %v828
    %v865 = vadd.f32 %v562, %v829
    %v866 = vadd.f32 %v742, %v830
    %v867 = vadd.f32 %v566, %v825
    %v868 = vadd.f32 %v568, %v826
    %v869 = vadd.f32 %v747, %v827
    %v870 = vadd.f32 %v570, %v828
    %v871 = vadd.f32 %v572, %v829
    %v872 = vadd.f32 %v750, %v830
    %v873 = vadd.f32 %v576, %v825
    %v874 = vadd.f32 %v578, %v826
    %v875 = vadd.f32 %v755, %v827
    %v876 = vadd.f32 %v580, %v828
    %v877 = vadd.f32 %v582, %v829
    %v878 = vadd.f32 %v758, %v830
    %v879 = vadd.f32 %v586, %v825
    %v880 = vadd.f32 %v588, %v826
    %v881 = vadd.f32 %v763, %v827
    %v882 = vadd.f32 %v590, %v828
    %v883 = vadd.f32 %v592, %v829
    %v884 = vadd.f32 %v766, %v830
    %v885 = vadd.f32 %v596, %v825
    %v886 = vadd.f32 %v598, %v826
    %v887 = vadd.f32 %v771, %v827
    %v888 = vadd.f32 %v600, %v828
    %v889 = vadd.f32 %v602, %v829
    %v890 = vadd.f32 %v774, %v830
    %v891 = vadd.f32 %v606, %v825
    %v892 = vadd.f32 %v608, %v826
    %v893 = vadd.f32 %v779, %v827
    %v894 = vadd.f32 %v610, %v828
    %v895 = vadd.f32 %v612, %v829
    %v896 = vadd.f32 %v782, %v830
    %v897 = vadd.f32 %v616, %v825
    %v898 = vadd.f32 %v618, %v826
    %v899 = vadd.f32 %v787, %v827
    %v900 = vadd.f32 %v620, %v828
    %v901 = vadd.f32 %v622, %v829
    %v902 = vadd.f32 %v790, %v830
    %v903 = vadd.f32 %v626, %v825
    %v904 = vadd.f32 %v628, %v826
    %v905 = vadd.f32 %v795, %v827
    %v906 = vadd.f32 %v630, %v828
    %v907 = vadd.f32 %v632, %v829
    %v908 = vadd.f32 %v798, %v830
    %v909 = vadd.f32 %v636, %v825
    %v910 = vadd.f32 %v638, %v826
    %v911 = vadd.f32 %v803, %v827
    %v912 = vadd.f32 %v640, %v828
    %v913 = vadd.f32 %v642, %v829
    %v914 = vadd.f32 %v806, %v830
    %v915 = vadd.f32 %v646, %v825
    %v916 = vadd.f32 %v648, %v826
    %v917 = vadd.f32 %v811, %v827
    %v918 = vadd.f32 %v650, %v828
    %v919 = vadd.f32 %v652, %v829
    %v920 = vadd.f32 %v814, %v830
    %v921 = vadd.f32 %v656, %v825
    %v922 = vadd.f32 %v658, %v826
    %v923 = vadd.f32 %v819, %v827
    %v924 = vadd.f32 %v660, %v828
    %v925 = vadd.f32 %v662, %v829
    %v926 = vadd.f32 %v822, %v830
    %v927 = vmax.f32 %v831, %v834
    %v928 = vrot.slane %v927, 4
    %v929 = vmax.f32 %v927, %v928
    %v930 = vrot.slane %v929, 2
    %v931 = vmax.f32 %v929, %v930
    %v932 = vrot.slane %v931, 1
    %v933 = vmax.f32 %v931, %v932
    %v934 = vmax.f32 %v832, %v835
    %v935 = vrot.slane %v934, 4
    %v936 = vmax.f32 %v934, %v935
    %v937 = vrot.slane %v936, 2
    %v938 = vmax.f32 %v936, %v937
    %v939 = vrot.slane %v938, 1
    %v940 = vmax.f32 %v938, %v939
    %v941 = vmax.f32 %v833, %v836
    %v942 = vrot.slane %v941, 4
    %v943 = vmax.f32 %v941, %v942
    %v944 = vrot.slane %v943, 2
    %v945 = vmax.f32 %v943, %v944
    %v946 = vrot.slane %v945, 1
    %v947 = vmax.f32 %v945, %v946
    %v948 = vmax.f32 %v837, %v840
    %v949 = vrot.slane %v948, 4
    %v950 = vmax.f32 %v948, %v949
    %v951 = vrot.slane %v950, 2
    %v952 = vmax.f32 %v950, %v951
    %v953 = vrot.slane %v952, 1
    %v954 = vmax.f32 %v952, %v953
    %v955 = vmax.f32 %v838, %v841
    %v956 = vrot.slane %v955, 4
    %v957 = vmax.f32 %v955, %v956
    %v958 = vrot.slane %v957, 2
    %v959 = vmax.f32 %v957, %v958
    %v960 = vrot.slane %v959, 1
    %v961 = vmax.f32 %v959, %v960
    %v962 = vmax.f32 %v839, %v842
    %v963 = vrot.slane %v962, 4
    %v964 = vmax.f32 %v962, %v963
    %v965 = vrot.slane %v964, 2
    %v966 = vmax.f32 %v964, %v965
    %v967 = vrot.slane %v966, 1
    %v968 = vmax.f32 %v966, %v967
    %v969 = vmax.f32 %v843, %v846
    %v970 = vrot.slane %v969, 4
    %v971 = vmax.f32 %v969, %v970
    %v972 = vrot.slane %v971, 2
    %v973 = vmax.f32 %v971, %v972
    %v974 = vrot.slane %v973, 1
    %v975 = vmax.f32 %v973, %v974
    %v976 = vmax.f32 %v844, %v847
    %v977 = vrot.slane %v976, 4
    %v978 = vmax.f32 %v976, %v977
    %v979 = vrot.slane %v978, 2
    %v980 = vmax.f32 %v978, %v979
    %v981 = vrot.slane %v980, 1
    %v982 = vmax.f32 %v980, %v981
    %v983 = vmax.f32 %v845, %v848
    %v984 = vrot.slane %v983, 4
    %v985 = vmax.f32 %v983, %v984
    %v986 = vrot.slane %v985, 2
    %v987 = vmax.f32 %v985, %v986
    %v988 = vrot.slane %v987, 1
    %v989 = vmax.f32 %v987, %v988
    %v990 = vmax.f32 %v849, %v852
    %v991 = vrot.slane %v990, 4
    %v992 = vmax.f32 %v990, %v991
    %v993 = vrot.slane %v992, 2
    %v994 = vmax.f32 %v992, %v993
    %v995 = vrot.slane %v994, 1
    %v996 = vmax.f32 %v994, %v995
    %v997 = vmax.f32 %v850, %v853
    %v998 = vrot.slane %v997, 4
    %v999 = vmax.f32 %v997, %v998
    %v1000 = vrot.slane %v999, 2
    %v1001 = vmax.f32 %v999, %v1000
    %v1002 = vrot.slane %v1001, 1
    %v1003 = vmax.f32 %v1001, %v1002
    %v1004 = vmax.f32 %v851, %v854
    %v1005 = vrot.slane %v1004, 4
    %v1006 = vmax.f32 %v1004, %v1005
    %v1007 = vrot.slane %v1006, 2
    %v1008 = vmax.f32 %v1006, %v1007
    %v1009 = vrot.slane %v1008, 1
    %v1010 = vmax.f32 %v1008, %v1009
    %v1011 = vmax.f32 %v855, %v858
    %v1012 = vrot.slane %v1011, 4
    %v1013 = vmax.f32 %v1011, %v1012
    %v1014 = vrot.slane %v1013, 2
    %v1015 = vmax.f32 %v1013, %v1014
    %v1016 = vrot.slane %v1015, 1
    %v1017 = vmax.f32 %v1015, %v1016
    %v1018 = vmax.f32 %v856, %v859
    %v1019 = vrot.slane %v1018, 4
    %v1020 = vmax.f32 %v1018, %v1019
    %v1021 = vrot.slane %v1020, 2
    %v1022 = vmax.f32 %v1020, %v1021
    %v1023 = vrot.slane %v1022, 1
    %v1024 = vmax.f32 %v1022, %v1023
    %v1025 = vmax.f32 %v857, %v860
    %v1026 = vrot.slane %v1025, 4
    %v1027 = vmax.f32 %v1025, %v1026
    %v1028 = vrot.slane %v1027, 2
    %v1029 = vmax.f32 %v1027, %v1028
    %v1030 = vrot.slane %v1029, 1
    %v1031 = vmax.f32 %v1029, %v1030
    %v1032 = vmax.f32 %v861, %v864
    %v1033 = vrot.slane %v1032, 4
    %v1034 = vmax.f32 %v1032, %v1033
    %v1035 = vrot.slane %v1034, 2
    %v1036 = vmax.f32 %v1034, %v1035
    %v1037 = vrot.slane %v1036, 1
    %v1038 = vmax.f32 %v1036, %v1037
    %v1039 = vmax.f32 %v862, %v865
    %v1040 = vrot.slane %v1039, 4
    %v1041 = vmax.f32 %v1039, %v1040
    %v1042 = vrot.slane %v1041, 2
    %v1043 = vmax.f32 %v1041, %v1042
    %v1044 = vrot.slane %v1043, 1
    %v1045 = vmax.f32 %v1043, %v1044
    %v1046 = vmax.f32 %v863, %v866
    %v1047 = vrot.slane %v1046, 4
    %v1048 = vmax.f32 %v1046, %v1047
    %v1049 = vrot.slane %v1048, 2
    %v1050 = vmax.f32 %v1048, %v1049
    %v1051 = vrot.slane %v1050, 1
    %v1052 = vmax.f32 %v1050, %v1051
    %v1053 = vmax.f32 %v867, %v870
    %v1054 = vrot.slane %v1053, 4
    %v1055 = vmax.f32 %v1053, %v1054
    %v1056 = vrot.slane %v1055, 2
    %v1057 = vmax.f32 %v1055, %v1056
    %v1058 = vrot.slane %v1057, 1
    %v1059 = vmax.f32 %v1057, %v1058
    %v1060 = vmax.f32 %v868, %v871
    %v1061 = vrot.slane %v1060, 4
    %v1062 = vmax.f32 %v1060, %v1061
    %v1063 = vrot.slane %v1062, 2
    %v1064 = vmax.f32 %v1062, %v1063
    %v1065 = vrot.slane %v1064, 1
    %v1066 = vmax.f32 %v1064, %v1065
    %v1067 = vmax.f32 %v869, %v872
    %v1068 = vrot.slane %v1067, 4
    %v1069 = vmax.f32 %v1067, %v1068
    %v1070 = vrot.slane %v1069, 2
    %v1071 = vmax.f32 %v1069, %v1070
    %v1072 = vrot.slane %v1071, 1
    %v1073 = vmax.f32 %v1071, %v1072
    %v1074 = vmax.f32 %v873, %v876
    %v1075 = vrot.slane %v1074, 4
    %v1076 = vmax.f32 %v1074, %v1075
    %v1077 = vrot.slane %v1076, 2
    %v1078 = vmax.f32 %v1076, %v1077
    %v1079 = vrot.slane %v1078, 1
    %v1080 = vmax.f32 %v1078, %v1079
    %v1081 = vmax.f32 %v874, %v877
    %v1082 = vrot.slane %v1081, 4
    %v1083 = vmax.f32 %v1081, %v1082
    %v1084 = vrot.slane %v1083, 2
    %v1085 = vmax.f32 %v1083, %v1084
    %v1086 = vrot.slane %v1085, 1
    %v1087 = vmax.f32 %v1085, %v1086
    %v1088 = vmax.f32 %v875, %v878
    %v1089 = vrot.slane %v1088, 4
    %v1090 = vmax.f32 %v1088, %v1089
    %v1091 = vrot.slane %v1090, 2
    %v1092 = vmax.f32 %v1090, %v1091
    %v1093 = vrot.slane %v1092, 1
    %v1094 = vmax.f32 %v1092, %v1093
    %v1095 = vmax.f32 %v879, %v882
    %v1096 = vrot.slane %v1095, 4
    %v1097 = vmax.f32 %v1095, %v1096
    %v1098 = vrot.slane %v1097, 2
    %v1099 = vmax.f32 %v1097, %v1098
    %v1100 = vrot.slane %v1099, 1
    %v1101 = vmax.f32 %v1099, %v1100
    %v1102 = vmax.f32 %v880, %v883
    %v1103 = vrot.slane %v1102, 4
    %v1104 = vmax.f32 %v1102, %v1103
    %v1105 = vrot.slane %v1104, 2
    %v1106 = vmax.f32 %v1104, %v1105
    %v1107 = vrot.slane %v1106, 1
    %v1108 = vmax.f32 %v1106, %v1107
    %v1109 = vmax.f32 %v881, %v884
    %v1110 = vrot.slane %v1109, 4
    %v1111 = vmax.f32 %v1109, %v1110
    %v1112 = vrot.slane %v1111, 2
    %v1113 = vmax.f32 %v1111, %v1112
    %v1114 = vrot.slane %v1113, 1
    %v1115 = vmax.f32 %v1113, %v1114
    %v1116 = vmax.f32 %v885, %v888
    %v1117 = vrot.slane %v1116, 4
    %v1118 = vmax.f32 %v1116, %v1117
    %v1119 = vrot.slane %v1118, 2
    %v1120 = vmax.f32 %v1118, %v1119
    %v1121 = vrot.slane %v1120, 1
    %v1122 = vmax.f32 %v1120, %v1121
    %v1123 = vmax.f32 %v886, %v889
    %v1124 = vrot.slane %v1123, 4
    %v1125 = vmax.f32 %v1123, %v1124
    %v1126 = vrot.slane %v1125, 2
    %v1127 = vmax.f32 %v1125, %v1126
    %v1128 = vrot.slane %v1127, 1
    %v1129 = vmax.f32 %v1127, %v1128
    %v1130 = vmax.f32 %v887, %v890
    %v1131 = vrot.slane %v1130, 4
    %v1132 = vmax.f32 %v1130, %v1131
    %v1133 = vrot.slane %v1132, 2
    %v1134 = vmax.f32 %v1132, %v1133
    %v1135 = vrot.slane %v1134, 1
    %v1136 = vmax.f32 %v1134, %v1135
    %v1137 = vmax.f32 %v891, %v894
    %v1138 = vrot.slane %v1137, 4
    %v1139 = vmax.f32 %v1137, %v1138
    %v1140 = vrot.slane %v1139, 2
    %v1141 = vmax.f32 %v1139, %v1140
    %v1142 = vrot.slane %v1141, 1
    %v1143 = vmax.f32 %v1141, %v1142
    %v1144 = vmax.f32 %v892, %v895
    %v1145 = vrot.slane %v1144, 4
    %v1146 = vmax.f32 %v1144, %v1145
    %v1147 = vrot.slane %v1146, 2
    %v1148 = vmax.f32 %v1146, %v1147
    %v1149 = vrot.slane %v1148, 1
    %v1150 = vmax.f32 %v1148, %v1149
    %v1151 = vmax.f32 %v893, %v896
    %v1152 = vrot.slane %v1151, 4
    %v1153 = vmax.f32 %v1151, %v1152
    %v1154 = vrot.slane %v1153, 2
    %v1155 = vmax.f32 %v1153, %v1154
    %v1156 = vrot.slane %v1155, 1
    %v1157 = vmax.f32 %v1155, %v1156
    %v1158 = vmax.f32 %v897, %v900
    %v1159 = vrot.slane %v1158, 4
    %v1160 = vmax.f32 %v1158, %v1159
    %v1161 = vrot.slane %v1160, 2
    %v1162 = vmax.f32 %v1160, %v1161
    %v1163 = vrot.slane %v1162, 1
    %v1164 = vmax.f32 %v1162, %v1163
    %v1165 = vmax.f32 %v898, %v901
    %v1166 = vrot.slane %v1165, 4
    %v1167 = vmax.f32 %v1165, %v1166
    %v1168 = vrot.slane %v1167, 2
    %v1169 = vmax.f32 %v1167, %v1168
    %v1170 = vrot.slane %v1169, 1
    %v1171 = vmax.f32 %v1169, %v1170
    %v1172 = vmax.f32 %v899, %v902
    %v1173 = vrot.slane %v1172, 4
    %v1174 = vmax.f32 %v1172, %v1173
    %v1175 = vrot.slane %v1174, 2
    %v1176 = vmax.f32 %v1174, %v1175
    %v1177 = vrot.slane %v1176, 1
    %v1178 = vmax.f32 %v1176, %v1177
    %v1179 = vmax.f32 %v903, %v906
    %v1180 = vrot.slane %v1179, 4
    %v1181 = vmax.f32 %v1179, %v1180
    %v1182 = vrot.slane %v1181, 2
    %v1183 = vmax.f32 %v1181, %v1182
    %v1184 = vrot.slane %v1183, 1
    %v1185 = vmax.f32 %v1183, %v1184
    %v1186 = vmax.f32 %v904, %v907
    %v1187 = vrot.slane %v1186, 4
    %v1188 = vmax.f32 %v1186, %v1187
    %v1189 = vrot.slane %v1188, 2
    %v1190 = vmax.f32 %v1188, %v1189
    %v1191 = vrot.slane %v1190, 1
    %v1192 = vmax.f32 %v1190, %v1191
    %v1193 = vmax.f32 %v905, %v908
    %v1194 = vrot.slane %v1193, 4
    %v1195 = vmax.f32 %v1193, %v1194
    %v1196 = vrot.slane %v1195, 2
    %v1197 = vmax.f32 %v1195, %v1196
    %v1198 = vrot.slane %v1197, 1
    %v1199 = vmax.f32 %v1197, %v1198
    %v1200 = vmax.f32 %v909, %v912
    %v1201 = vrot.slane %v1200, 4
    %v1202 = vmax.f32 %v1200, %v1201
    %v1203 = vrot.slane %v1202, 2
    %v1204 = vmax.f32 %v1202, %v1203
    %v1205 = vrot.slane %v1204, 1
    %v1206 = vmax.f32 %v1204, %v1205
    %v1207 = vmax.f32 %v910, %v913
    %v1208 = vrot.slane %v1207, 4
    %v1209 = vmax.f32 %v1207, %v1208
    %v1210 = vrot.slane %v1209, 2
    %v1211 = vmax.f32 %v1209, %v1210
    %v1212 = vrot.slane %v1211, 1
    %v1213 = vmax.f32 %v1211, %v1212
    %v1214 = vmax.f32 %v911, %v914
    %v1215 = vrot.slane %v1214, 4
    %v1216 = vmax.f32 %v1214, %v1215
    %v1217 = vrot.slane %v1216, 2
    %v1218 = vmax.f32 %v1216, %v1217
    %v1219 = vrot.slane %v1218, 1
    %v1220 = vmax.f32 %v1218, %v1219
    %v1221 = vmax.f32 %v915, %v918
    %v1222 = vrot.slane %v1221, 4
    %v1223 = vmax.f32 %v1221, %v1222
    %v1224 = vrot.slane %v1223, 2
    %v1225 = vmax.f32 %v1223, %v1224
    %v1226 = vrot.slane %v1225, 1
    %v1227 = vmax.f32 %v1225, %v1226
    %v1228 = vmax.f32 %v916, %v919
    %v1229 = vrot.slane %v1228, 4
    %v1230 = vmax.f32 %v1228, %v1229
    %v1231 = vrot.slane %v1230, 2
    %v1232 = vmax.f32 %v1230, %v1231
    %v1233 = vrot.slane %v1232, 1
    %v1234 = vmax.f32 %v1232, %v1233
    %v1235 = vmax.f32 %v917, %v920
    %v1236 = vrot.slane %v1235, 4
    %v1237 = vmax.f32 %v1235, %v1236
    %v1238 = vrot.slane %v1237, 2
    %v1239 = vmax.f32 %v1237, %v1238
    %v1240 = vrot.slane %v1239, 1
    %v1241 = vmax.f32 %v1239, %v1240
    %v1242 = vmax.f32 %v921, %v924
    %v1243 = vrot.slane %v1242, 4
    %v1244 = vmax.f32 %v1242, %v1243
    %v1245 = vrot.slane %v1244, 2
    %v1246 = vmax.f32 %v1244, %v1245
    %v1247 = vrot.slane %v1246, 1
    %v1248 = vmax.f32 %v1246, %v1247
    %v1249 = vmax.f32 %v922, %v925
    %v1250 = vrot.slane %v1249, 4
    %v1251 = vmax.f32 %v1249, %v1250
    %v1252 = vrot.slane %v1251, 2
    %v1253 = vmax.f32 %v1251, %v1252
    %v1254 = vrot.slane %v1253, 1
    %v1255 = vmax.f32 %v1253, %v1254
    %v1256 = vmax.f32 %v923, %v926
    %v1257 = vrot.slane %v1256, 4
    %v1258 = vmax.f32 %v1256, %v1257
    %v1259 = vrot.slane %v1258, 2
    %v1260 = vmax.f32 %v1258, %v1259
    %v1261 = vrot.slane %v1260, 1
    %v1262 = vmax.f32 %v1260, %v1261
    %v1263 = vld [vmem:[%s4] sm:$0x7]
    %v1265 = vlaneseq
    %v1266 = vshrl.u32 %v1265, 7
    %v1267 = vsub.s32 0, %v1266
    %v1268 = vrot.slane %v1263, %v1267
    %v1269 = vlaneseq
    %v1270 = vshrl.u32 %v1269, 7
    %v1271 = vsub.s32 1, %v1270
    %v1272 = vrot.slane %v1263, %v1271
    %v1273 = vlaneseq
    %v1274 = vshrl.u32 %v1273, 7
    %v1275 = vsub.s32 2, %v1274
    %v1276 = vrot.slane %v1263, %v1275
    %v1280 = vadd.f32 %v933, %v1268
    %v1281 = vadd.f32 %v940, %v1272
    %v1282 = vadd.f32 %v947, %v1276
    %v1283 = vadd.f32 %v954, %v1268
    %v1284 = vadd.f32 %v961, %v1272
    %v1285 = vadd.f32 %v968, %v1276
    %v1286 = vadd.f32 %v975, %v1268
    %v1287 = vadd.f32 %v982, %v1272
    %v1288 = vadd.f32 %v989, %v1276
    %v1289 = vadd.f32 %v996, %v1268
    %v1290 = vadd.f32 %v1003, %v1272
    %v1291 = vadd.f32 %v1010, %v1276
    %v1292 = vadd.f32 %v1017, %v1268
    %v1293 = vadd.f32 %v1024, %v1272
    %v1294 = vadd.f32 %v1031, %v1276
    %v1295 = vadd.f32 %v1038, %v1268
    %v1296 = vadd.f32 %v1045, %v1272
    %v1297 = vadd.f32 %v1052, %v1276
    %v1298 = vadd.f32 %v1059, %v1268
    %v1299 = vadd.f32 %v1066, %v1272
    %v1300 = vadd.f32 %v1073, %v1276
    %v1301 = vadd.f32 %v1080, %v1268
    %v1302 = vadd.f32 %v1087, %v1272
    %v1303 = vadd.f32 %v1094, %v1276
    %v1304 = vadd.f32 %v1101, %v1268
    %v1305 = vadd.f32 %v1108, %v1272
    %v1306 = vadd.f32 %v1115, %v1276
    %v1307 = vadd.f32 %v1122, %v1268
    %v1308 = vadd.f32 %v1129, %v1272
    %v1309 = vadd.f32 %v1136, %v1276
    %v1310 = vadd.f32 %v1143, %v1268
    %v1311 = vadd.f32 %v1150, %v1272
    %v1312 = vadd.f32 %v1157, %v1276
    %v1313 = vadd.f32 %v1164, %v1268
    %v1314 = vadd.f32 %v1171, %v1272
    %v1315 = vadd.f32 %v1178, %v1276
    %v1316 = vadd.f32 %v1185, %v1268
    %v1317 = vadd.f32 %v1192, %v1272
    %v1318 = vadd.f32 %v1199, %v1276
    %v1319 = vadd.f32 %v1206, %v1268
    %v1320 = vadd.f32 %v1213, %v1272
    %v1321 = vadd.f32 %v1220, %v1276
    %v1322 = vadd.f32 %v1227, %v1268
    %v1323 = vadd.f32 %v1234, %v1272
    %v1324 = vadd.f32 %v1241, %v1276
    %v1325 = vadd.f32 %v1248, %v1268
    %v1326 = vadd.f32 %v1255, %v1272
    %v1327 = vadd.f32 %v1262, %v1276
    %v1328 = vmax.f32 %v1280, 0.0
    %v1329 = vmax.f32 %v1281, 0.0
    %v1330 = vmax.f32 %v1282, 0.0
    %v1331 = vmax.f32 %v1283, 0.0
    %v1332 = vmax.f32 %v1284, 0.0
    %v1333 = vmax.f32 %v1285, 0.0
    %v1334 = vmax.f32 %v1286, 0.0
    %v1335 = vmax.f32 %v1287, 0.0
    %v1336 = vmax.f32 %v1288, 0.0
    %v1337 = vmax.f32 %v1289, 0.0
    %v1338 = vmax.f32 %v1290, 0.0
    %v1339 = vmax.f32 %v1291, 0.0
    %v1340 = vmax.f32 %v1292, 0.0
    %v1341 = vmax.f32 %v1293, 0.0
    %v1342 = vmax.f32 %v1294, 0.0
    %v1343 = vmax.f32 %v1295, 0.0
    %v1344 = vmax.f32 %v1296, 0.0
    %v1345 = vmax.f32 %v1297, 0.0
    %v1346 = vmax.f32 %v1298, 0.0
    %v1347 = vmax.f32 %v1299, 0.0
    %v1348 = vmax.f32 %v1300, 0.0
    %v1349 = vmax.f32 %v1301, 0.0
    %v1350 = vmax.f32 %v1302, 0.0
    %v1351 = vmax.f32 %v1303, 0.0
    %v1352 = vmax.f32 %v1304, 0.0
    %v1353 = vmax.f32 %v1305, 0.0
    %v1354 = vmax.f32 %v1306, 0.0
    %v1355 = vmax.f32 %v1307, 0.0
    %v1356 = vmax.f32 %v1308, 0.0
    %v1357 = vmax.f32 %v1309, 0.0
    %v1358 = vmax.f32 %v1310, 0.0
    %v1359 = vmax.f32 %v1311, 0.0
    %v1360 = vmax.f32 %v1312, 0.0
    %v1361 = vmax.f32 %v1313, 0.0
    %v1362 = vmax.f32 %v1314, 0.0
    %v1363 = vmax.f32 %v1315, 0.0
    %v1364 = vmax.f32 %v1316, 0.0
    %v1365 = vmax.f32 %v1317, 0.0
    %v1366 = vmax.f32 %v1318, 0.0
    %v1367 = vmax.f32 %v1319, 0.0
    %v1368 = vmax.f32 %v1320, 0.0
    %v1369 = vmax.f32 %v1321, 0.0
    %v1370 = vmax.f32 %v1322, 0.0
    %v1371 = vmax.f32 %v1323, 0.0
    %v1372 = vmax.f32 %v1324, 0.0
    %v1373 = vmax.f32 %v1325, 0.0
    %v1374 = vmax.f32 %v1326, 0.0
    %v1375 = vmax.f32 %v1327, 0.0
    %v1376 = vpack.c.bf16 %v1328, %v1328
    %v1377 = vpack.c.bf16 %v1329, %v1329
    %v1378 = vpack.c.bf16 %v1330, %v1330
    %v1379 = vpack.c.bf16 %v1331, %v1331
    %v1380 = vpack.c.bf16 %v1332, %v1332
    %v1381 = vpack.c.bf16 %v1333, %v1333
    %v1382 = vpack.c.bf16 %v1334, %v1334
    %v1383 = vpack.c.bf16 %v1335, %v1335
    %v1384 = vpack.c.bf16 %v1336, %v1336
    %v1385 = vpack.c.bf16 %v1337, %v1337
    %v1386 = vpack.c.bf16 %v1338, %v1338
    %v1387 = vpack.c.bf16 %v1339, %v1339
    %v1388 = vpack.c.bf16 %v1340, %v1340
    %v1389 = vpack.c.bf16 %v1341, %v1341
    %v1390 = vpack.c.bf16 %v1342, %v1342
    %v1391 = vpack.c.bf16 %v1343, %v1343
    %v1392 = vpack.c.bf16 %v1344, %v1344
    %v1393 = vpack.c.bf16 %v1345, %v1345
    %v1394 = vpack.c.bf16 %v1346, %v1346
    %v1395 = vpack.c.bf16 %v1347, %v1347
    %v1396 = vpack.c.bf16 %v1348, %v1348
    %v1397 = vpack.c.bf16 %v1349, %v1349
    %v1398 = vpack.c.bf16 %v1350, %v1350
    %v1399 = vpack.c.bf16 %v1351, %v1351
    %v1400 = vpack.c.bf16 %v1352, %v1352
    %v1401 = vpack.c.bf16 %v1353, %v1353
    %v1402 = vpack.c.bf16 %v1354, %v1354
    %v1403 = vpack.c.bf16 %v1355, %v1355
    %v1404 = vpack.c.bf16 %v1356, %v1356
    %v1405 = vpack.c.bf16 %v1357, %v1357
    %v1406 = vpack.c.bf16 %v1358, %v1358
    %v1407 = vpack.c.bf16 %v1359, %v1359
    %v1408 = vpack.c.bf16 %v1360, %v1360
    %v1409 = vpack.c.bf16 %v1361, %v1361
    %v1410 = vpack.c.bf16 %v1362, %v1362
    %v1411 = vpack.c.bf16 %v1363, %v1363
    %v1412 = vpack.c.bf16 %v1364, %v1364
    %v1413 = vpack.c.bf16 %v1365, %v1365
    %v1414 = vpack.c.bf16 %v1366, %v1366
    %v1415 = vpack.c.bf16 %v1367, %v1367
    %v1416 = vpack.c.bf16 %v1368, %v1368
    %v1417 = vpack.c.bf16 %v1369, %v1369
    %v1418 = vpack.c.bf16 %v1370, %v1370
    %v1419 = vpack.c.bf16 %v1371, %v1371
    %v1420 = vpack.c.bf16 %v1372, %v1372
    %v1421 = vpack.c.bf16 %v1373, %v1373
    %v1422 = vpack.c.bf16 %v1374, %v1374
    %v1423 = vpack.c.bf16 %v1375, %v1375
    %v1424 = vld [vmem:[#allocation4] sm:$0xf]
    %v1425 = vld [vmem:[#allocation4 + $0x4] sm:$0xf]
    %v1426 = vld [vmem:[#allocation4 + $0x8] sm:$0xf]
    %v1427 = vld [vmem:[#allocation4 + $0xc] sm:$0xf]
    %v1428 = vld [vmem:[#allocation4 + $0x10] sm:$0xf]
    %v1429 = vld [vmem:[#allocation4 + $0x14] sm:$0xf]
    %v1430 = vld [vmem:[#allocation4 + $0x18] sm:$0xf]
    %v1431 = vld [vmem:[#allocation4 + $0x1c] sm:$0xf]
    %v1432 = vld [vmem:[#allocation4 + $0x20] sm:$0xf]
    %v1433 = vld [vmem:[#allocation4 + $0x24] sm:$0xf]
    %v1434 = vld [vmem:[#allocation4 + $0x28] sm:$0xf]
    %v1435 = vld [vmem:[#allocation4 + $0x2c] sm:$0xf]
    %v1436 = vld [vmem:[#allocation4 + $0x30] sm:$0xf]
    %v1437 = vld [vmem:[#allocation4 + $0x34] sm:$0xf]
    %v1438 = vld [vmem:[#allocation4 + $0x38] sm:$0xf]
    %v1439 = vld [vmem:[#allocation4 + $0x3c] sm:$0xf]
    %v1440 = vld [vmem:[#allocation4 + $0x40] sm:$0xf]
    %v1441 = vld [vmem:[#allocation4 + $0x44] sm:$0xf]
    %v1442 = vld [vmem:[#allocation4 + $0x48] sm:$0xf]
    %v1443 = vld [vmem:[#allocation4 + $0x4c] sm:$0xf]
    %v1444 = vld [vmem:[#allocation4 + $0x50] sm:$0xf]
    %v1445 = vld [vmem:[#allocation4 + $0x54] sm:$0xf]
    %v1446 = vld [vmem:[#allocation4 + $0x58] sm:$0xf]
    %v1447 = vld [vmem:[#allocation4 + $0x5c] sm:$0xf]
    %v1448 = vld [vmem:[#allocation4 + $0x60] sm:$0xf]
    %v1449 = vld [vmem:[#allocation4 + $0x64] sm:$0xf]
    %v1450 = vld [vmem:[#allocation4 + $0x68] sm:$0xf]
    %v1451 = vld [vmem:[#allocation4 + $0x6c] sm:$0xf]
    %v1452 = vld [vmem:[#allocation4 + $0x70] sm:$0xf]
    %v1453 = vld [vmem:[#allocation4 + $0x74] sm:$0xf]
    %v1454 = vld [vmem:[#allocation4 + $0x78] sm:$0xf]
    %v1455 = vld [vmem:[#allocation4 + $0x7c] sm:$0xf]
    %v1456 = vld [vmem:[#allocation4 + $0x80] sm:$0xf]
    %v1457 = vld [vmem:[#allocation4 + $0x84] sm:$0xf]
    %v1458 = vld [vmem:[#allocation4 + $0x88] sm:$0xf]
    %v1459 = vld [vmem:[#allocation4 + $0x8c] sm:$0xf]
    %v1460 = vld [vmem:[#allocation4 + $0x90] sm:$0xf]
    %v1461 = vld [vmem:[#allocation4 + $0x94] sm:$0xf]
    %v1462 = vld [vmem:[#allocation4 + $0x98] sm:$0xf]
    %v1463 = vld [vmem:[#allocation4 + $0x9c] sm:$0xf]
    %v1464 = vld [vmem:[#allocation4 + $0xa0] sm:$0xf]
    %v1465 = vld [vmem:[#allocation4 + $0xa4] sm:$0xf]
    %v1466 = vld [vmem:[#allocation4 + $0xa8] sm:$0xf]
    %v1467 = vld [vmem:[#allocation4 + $0xac] sm:$0xf]
    %v1468 = vld [vmem:[#allocation4 + $0xb0] sm:$0xf]
    %v1469 = vld [vmem:[#allocation4 + $0xb4] sm:$0xf]
    %v1470 = vld [vmem:[#allocation4 + $0xb8] sm:$0xf]
    %v1471 = vld [vmem:[#allocation4 + $0xbc] sm:$0xf]
    %v1472 = vld [vmem:[%s6] sm:$0x1]
    %v1474 = vlaneseq
    %v1475 = vshrl.u32 %v1474, 7
    %v1476 = vsub.s32 0, %v1475
    %v1477 = vrot.slane %v1472, %v1476
    %v1527 = vunpack.c.l.b16 %v1376
    %v1528 = vunpack.c.l.b16 %v1377
    %v1529 = vunpack.c.l.b16 %v1378
    %v1530 = vunpack.c.l.b16 %v1379
    %v1531 = vunpack.c.l.b16 %v1380
    %v1532 = vunpack.c.l.b16 %v1381
    %v1533 = vunpack.c.l.b16 %v1382
    %v1534 = vunpack.c.l.b16 %v1383
    %v1535 = vunpack.c.l.b16 %v1384
    %v1536 = vunpack.c.l.b16 %v1385
    %v1537 = vunpack.c.l.b16 %v1386
    %v1538 = vunpack.c.l.b16 %v1387
    %v1539 = vunpack.c.l.b16 %v1388
    %v1540 = vunpack.c.l.b16 %v1389
    %v1541 = vunpack.c.l.b16 %v1390
    %v1542 = vunpack.c.l.b16 %v1391
    %v1543 = vunpack.c.l.b16 %v1392
    %v1544 = vunpack.c.l.b16 %v1393
    %v1545 = vunpack.c.l.b16 %v1394
    %v1546 = vunpack.c.l.b16 %v1395
    %v1547 = vunpack.c.l.b16 %v1396
    %v1548 = vunpack.c.l.b16 %v1397
    %v1549 = vunpack.c.l.b16 %v1398
    %v1550 = vunpack.c.l.b16 %v1399
    %v1551 = vunpack.c.l.b16 %v1400
    %v1552 = vunpack.c.l.b16 %v1401
    %v1553 = vunpack.c.l.b16 %v1402
    %v1554 = vunpack.c.l.b16 %v1403
    %v1555 = vunpack.c.l.b16 %v1404
    %v1556 = vunpack.c.l.b16 %v1405
    %v1557 = vunpack.c.l.b16 %v1406
    %v1558 = vunpack.c.l.b16 %v1407
    %v1559 = vunpack.c.l.b16 %v1408
    %v1560 = vunpack.c.l.b16 %v1409
    %v1561 = vunpack.c.l.b16 %v1410
    %v1562 = vunpack.c.l.b16 %v1411
    %v1563 = vunpack.c.l.b16 %v1412
    %v1564 = vunpack.c.l.b16 %v1413
    %v1565 = vunpack.c.l.b16 %v1414
    %v1566 = vunpack.c.l.b16 %v1415
    %v1567 = vunpack.c.l.b16 %v1416
    %v1568 = vunpack.c.l.b16 %v1417
    %v1569 = vunpack.c.l.b16 %v1418
    %v1570 = vunpack.c.l.b16 %v1419
    %v1571 = vunpack.c.l.b16 %v1420
    %v1572 = vunpack.c.l.b16 %v1421
    %v1573 = vunpack.c.l.b16 %v1422
    %v1574 = vunpack.c.l.b16 %v1423
    %v1575 = vrot.slane %v1530, 7
    %vm1576 = vcmask 1041409
    %v1577 = vsel %vm1576, %v1575, %v1527
    %v1578 = vrot.slane %v1533, 6
    %vm1579 = vcmask 1042434
    %v1580 = vsel %vm1579, %v1578, %v1577
    %v1581 = vrot.slane %v1536, 5
    %vm1582 = vcmask 1043459
    %v1583 = vsel %vm1582, %v1581, %v1580
    %v1584 = vrot.slane %v1539, 4
    %vm1585 = vcmask 1044484
    %v1586 = vsel %vm1585, %v1584, %v1583
    %v1587 = vrot.slane %v1542, 3
    %vm1588 = vcmask 1045509
    %v1589 = vsel %vm1588, %v1587, %v1586
    %v1590 = vrot.slane %v1545, 2
    %vm1591 = vcmask 1046534
    %v1592 = vsel %vm1591, %v1590, %v1589
    %v1593 = vrot.slane %v1548, 1
    %vm1594 = vcmask 1047559
    %v1595 = vsel %vm1594, %v1593, %v1592
    %v1596 = vrot.slane %v1531, 7
    %v1597 = vsel %vm1576, %v1596, %v1528
    %v1598 = vrot.slane %v1534, 6
    %v1599 = vsel %vm1579, %v1598, %v1597
    %v1600 = vrot.slane %v1537, 5
    %v1601 = vsel %vm1582, %v1600, %v1599
    %v1602 = vrot.slane %v1540, 4
    %v1603 = vsel %vm1585, %v1602, %v1601
    %v1604 = vrot.slane %v1543, 3
    %v1605 = vsel %vm1588, %v1604, %v1603
    %v1606 = vrot.slane %v1546, 2
    %v1607 = vsel %vm1591, %v1606, %v1605
    %v1608 = vrot.slane %v1549, 1
    %v1609 = vsel %vm1594, %v1608, %v1607
    %v1610 = vrot.slane %v1532, 7
    %v1611 = vsel %vm1576, %v1610, %v1529
    %v1612 = vrot.slane %v1535, 6
    %v1613 = vsel %vm1579, %v1612, %v1611
    %v1614 = vrot.slane %v1538, 5
    %v1615 = vsel %vm1582, %v1614, %v1613
    %v1616 = vrot.slane %v1541, 4
    %v1617 = vsel %vm1585, %v1616, %v1615
    %v1618 = vrot.slane %v1544, 3
    %v1619 = vsel %vm1588, %v1618, %v1617
    %v1620 = vrot.slane %v1547, 2
    %v1621 = vsel %vm1591, %v1620, %v1619
    %v1622 = vrot.slane %v1550, 1
    %v1623 = vsel %vm1594, %v1622, %v1621
    %v1624 = vrot.slane %v1554, 7
    %v1625 = vsel %vm1576, %v1624, %v1551
    %v1626 = vrot.slane %v1557, 6
    %v1627 = vsel %vm1579, %v1626, %v1625
    %v1628 = vrot.slane %v1560, 5
    %v1629 = vsel %vm1582, %v1628, %v1627
    %v1630 = vrot.slane %v1563, 4
    %v1631 = vsel %vm1585, %v1630, %v1629
    %v1632 = vrot.slane %v1566, 3
    %v1633 = vsel %vm1588, %v1632, %v1631
    %v1634 = vrot.slane %v1569, 2
    %v1635 = vsel %vm1591, %v1634, %v1633
    %v1636 = vrot.slane %v1572, 1
    %v1637 = vsel %vm1594, %v1636, %v1635
    %v1638 = vrot.slane %v1555, 7
    %v1639 = vsel %vm1576, %v1638, %v1552
    %v1640 = vrot.slane %v1558, 6
    %v1641 = vsel %vm1579, %v1640, %v1639
    %v1642 = vrot.slane %v1561, 5
    %v1643 = vsel %vm1582, %v1642, %v1641
    %v1644 = vrot.slane %v1564, 4
    %v1645 = vsel %vm1585, %v1644, %v1643
    %v1646 = vrot.slane %v1567, 3
    %v1647 = vsel %vm1588, %v1646, %v1645
    %v1648 = vrot.slane %v1570, 2
    %v1649 = vsel %vm1591, %v1648, %v1647
    %v1650 = vrot.slane %v1573, 1
    %v1651 = vsel %vm1594, %v1650, %v1649
    %v1652 = vrot.slane %v1556, 7
    %v1653 = vsel %vm1576, %v1652, %v1553
    %v1654 = vrot.slane %v1559, 6
    %v1655 = vsel %vm1579, %v1654, %v1653
    %v1656 = vrot.slane %v1562, 5
    %v1657 = vsel %vm1582, %v1656, %v1655
    %v1658 = vrot.slane %v1565, 4
    %v1659 = vsel %vm1585, %v1658, %v1657
    %v1660 = vrot.slane %v1568, 3
    %v1661 = vsel %vm1588, %v1660, %v1659
    %v1662 = vrot.slane %v1571, 2
    %v1663 = vsel %vm1591, %v1662, %v1661
    %v1664 = vrot.slane %v1574, 1
    %v1665 = vsel %vm1594, %v1664, %v1663
    %v1666 = vpack.c.b16 %v1637, %v1595
    %v1667 = vpack.c.b16 %v1651, %v1609
    %v1668 = vpack.c.b16 %v1665, %v1623
    %v1720 = vunpack.c.l.b16 %v1424
    %v1721 = vunpack.c.l.b16 %v1425
    %v1722 = vunpack.c.l.b16 %v1426
    %v1723 = vunpack.c.l.b16 %v1427
    %v1724 = vunpack.c.l.b16 %v1428
    %v1725 = vunpack.c.l.b16 %v1429
    %v1726 = vunpack.c.l.b16 %v1430
    %v1727 = vunpack.c.l.b16 %v1431
    %v1728 = vunpack.c.l.b16 %v1432
    %v1729 = vunpack.c.l.b16 %v1433
    %v1730 = vunpack.c.l.b16 %v1434
    %v1731 = vunpack.c.l.b16 %v1435
    %v1732 = vunpack.c.l.b16 %v1436
    %v1733 = vunpack.c.l.b16 %v1437
    %v1734 = vunpack.c.l.b16 %v1438
    %v1735 = vunpack.c.l.b16 %v1439
    %v1736 = vunpack.c.l.b16 %v1440
    %v1737 = vunpack.c.l.b16 %v1441
    %v1738 = vunpack.c.l.b16 %v1442
    %v1739 = vunpack.c.l.b16 %v1443
    %v1740 = vunpack.c.l.b16 %v1444
    %v1741 = vunpack.c.l.b16 %v1445
    %v1742 = vunpack.c.l.b16 %v1446
    %v1743 = vunpack.c.l.b16 %v1447
    %v1744 = vunpack.c.l.b16 %v1448
    %v1745 = vunpack.c.l.b16 %v1449
    %v1746 = vunpack.c.l.b16 %v1450
    %v1747 = vunpack.c.l.b16 %v1451
    %v1748 = vunpack.c.l.b16 %v1452
    %v1749 = vunpack.c.l.b16 %v1453
    %v1750 = vunpack.c.l.b16 %v1454
    %v1751 = vunpack.c.l.b16 %v1455
    %v1752 = vunpack.c.l.b16 %v1456
    %v1753 = vunpack.c.l.b16 %v1457
    %v1754 = vunpack.c.l.b16 %v1458
    %v1755 = vunpack.c.l.b16 %v1459
    %v1756 = vunpack.c.l.b16 %v1460
    %v1757 = vunpack.c.l.b16 %v1461
    %v1758 = vunpack.c.l.b16 %v1462
    %v1759 = vunpack.c.l.b16 %v1463
    %v1760 = vunpack.c.l.b16 %v1464
    %v1761 = vunpack.c.l.b16 %v1465
    %v1762 = vunpack.c.l.b16 %v1466
    %v1763 = vunpack.c.l.b16 %v1467
    %v1764 = vunpack.c.l.b16 %v1468
    %v1765 = vunpack.c.l.b16 %v1469
    %v1766 = vunpack.c.l.b16 %v1470
    %v1767 = vunpack.c.l.b16 %v1471
    %v1768 = vpack.c.b16 %v1721, %v1720
    %v1769 = vpack.c.b16 %v1723, %v1722
    %v1770 = vpack.c.b16 %v1725, %v1724
    %v1771 = vpack.c.b16 %v1727, %v1726
    %v1772 = vpack.c.b16 %v1729, %v1728
    %v1773 = vpack.c.b16 %v1731, %v1730
    %v1774 = vpack.c.b16 %v1733, %v1732
    %v1775 = vpack.c.b16 %v1735, %v1734
    %v1776 = vpack.c.b16 %v1737, %v1736
    %v1777 = vpack.c.b16 %v1739, %v1738
    %v1778 = vpack.c.b16 %v1741, %v1740
    %v1779 = vpack.c.b16 %v1743, %v1742
    %v1780 = vpack.c.b16 %v1745, %v1744
    %v1781 = vpack.c.b16 %v1747, %v1746
    %v1782 = vpack.c.b16 %v1749, %v1748
    %v1783 = vpack.c.b16 %v1751, %v1750
    %v1784 = vpack.c.b16 %v1753, %v1752
    %v1785 = vpack.c.b16 %v1755, %v1754
    %v1786 = vpack.c.b16 %v1757, %v1756
    %v1787 = vpack.c.b16 %v1759, %v1758
    %v1788 = vpack.c.b16 %v1761, %v1760
    %v1789 = vpack.c.b16 %v1763, %v1762
    %v1790 = vpack.c.b16 %v1765, %v1764
    %v1791 = vpack.c.b16 %v1767, %v1766
    %1816 = vmatprep.subr.bf16.mxu0 0
    %1817 = vmatpush1.bf16.msra.mxu0 %v1768
    %1818 = vmatprep.subr.bf16.mxu0 0
    %1819 = vmatpush1.bf16.msra.mxu0 %v1769
    %1820 = vmatprep.subr.bf16.mxu0 0
    %1821 = vmatpush1.bf16.msra.mxu0 %v1770
    %1822 = vmatprep.subr.bf16.mxu0 0
    %1823 = vmatpush1.bf16.msra.mxu0 %v1771
    %1824 = vmatprep.subr.bf16.mxu0 0
    %1825 = vmatpush1.bf16.msra.mxu0 %v1772
    %1826 = vmatprep.subr.bf16.mxu0 0
    %1827 = vmatpush1.bf16.msra.mxu0 %v1773
    %1828 = vmatprep.subr.bf16.mxu0 0
    %1829 = vmatpush1.bf16.msra.mxu0 %v1774
    %1830 = vmatprep.subr.bf16.mxu0 0
    %1831 = vmatpush1.bf16.msra.mxu0 %v1775
    %1832 = vmatprep.subr.bf16.mxu0 0
    %1833 = vmatpush1.bf16.msra.mxu0 %v1776
    %1834 = vmatprep.subr.bf16.mxu0 0
    %1835 = vmatpush1.bf16.msra.mxu0 %v1777
    %1836 = vmatprep.subr.bf16.mxu0 0
    %1837 = vmatpush1.bf16.msra.mxu0 %v1778
    %1838 = vmatprep.subr.bf16.mxu0 0
    %1839 = vmatpush1.bf16.msra.mxu0 %v1779
    %1840 = vmatprep.subr.bf16.mxu0 0
    %1841 = vmatpush1.bf16.msra.mxu0 %v1780
    %1842 = vmatprep.subr.bf16.mxu0 0
    %1843 = vmatpush1.bf16.msra.mxu0 %v1781
    %1844 = vmatprep.subr.bf16.mxu0 0
    %1845 = vmatpush1.bf16.msra.mxu0 %v1782
    %1846 = vmatprep.subr.bf16.mxu0 0
    %1847 = vmatpush1.bf16.msra.mxu0 %v1783
    %1848 = vmatprep.mubr.bf16.mxu0 %v1667
    %1849 = vmatmul.mubr.bf16.gmra.mrb[0].mxu0 %v1666
    %v1850 = vpop.f32.mrb[0].mxu0
    %v1851 = vadd.f32 %v1477, %v1850
    %v1852 = vpop.f32.mrb[0].mxu0
    %v1853 = vpop.f32.mrb[0].mxu0
    %v1854 = vadd.f32 %v1477, %v1853
    %v1855 = vpop.f32.mrb[0].mxu0
    %1856 = vdwg.mxu0
    %1857 = vmatprep.subr.bf16.mxu0 0
    %1858 = vmatpush1.bf16.msra.mxu0 %v1784
    %1859 = vmatprep.subr.bf16.mxu0 0
    %1860 = vmatpush1.bf16.msra.mxu0 %v1785
    %1861 = vmatprep.subr.bf16.mxu0 0
    %1862 = vmatpush1.bf16.msra.mxu0 %v1786
    %1863 = vmatprep.subr.bf16.mxu0 0
    %1864 = vmatpush1.bf16.msra.mxu0 %v1787
    %1865 = vmatprep.subr.bf16.mxu0 0
    %1866 = vmatpush1.bf16.msra.mxu0 %v1788
    %1867 = vmatprep.subr.bf16.mxu0 0
    %1868 = vmatpush1.bf16.msra.mxu0 %v1789
    %1869 = vmatprep.subr.bf16.mxu0 0
    %1870 = vmatpush1.bf16.msra.mxu0 %v1790
    %1871 = vmatprep.subr.bf16.mxu0 0
    %1872 = vmatpush1.bf16.msra.mxu0 %v1791
    %1873 = vmatprep.subr.bf16.mxu0 0
    %1874 = vmatpush1.bf16.msra.mxu0 0
    %1875 = vmatprep.subr.bf16.mxu0 0
    %1876 = vmatpush1.bf16.msra.mxu0 0
    %1877 = vmatprep.subr.bf16.mxu0 0
    %1878 = vmatpush1.bf16.msra.mxu0 0
    %1879 = vmatprep.subr.bf16.mxu0 0
    %1880 = vmatpush1.bf16.msra.mxu0 0
    %1881 = vmatprep.subr.bf16.mxu0 0
    %1882 = vmatpush1.bf16.msra.mxu0 0
    %1883 = vmatprep.subr.bf16.mxu0 0
    %1884 = vmatpush1.bf16.msra.mxu0 0
    %1885 = vmatprep.subr.bf16.mxu0 0
    %1886 = vmatpush1.bf16.msra.mxu0 0
    %1887 = vmatprep.subr.bf16.mxu0 0
    %1888 = vmatpush1.bf16.msra.mxu0 0
    %1889 = vmatprep.mubr.bf16.mxu0 0
    %1890 = vmatmul.mubr.bf16.gmra.mrb[0].mxu0 %v1668
    %v1891 = vpop.f32.mrb[0].mxu0
    %v1892 = vadd.f32 %v1851, %v1891
    %v1893 = vpop.f32.mrb[0].mxu0
    %v1894 = vpop.f32.mrb[0].mxu0
    %v1895 = vadd.f32 %v1854, %v1894
    %v1896 = vpop.f32.mrb[0].mxu0
    %1897 = vdwg.mxu0
    %1898 = vmax.xlane.f32.xlu0 %v1892
    %v1899 = vpop.xlane.xlu0 %1898
    %1900 = vmax.xlane.f32.xlu0 %v1895
    %v1901 = vpop.xlane.xlu0 %1900
    %v1902 = vsub.f32 %v1892, %v1899
    %v1903 = vsub.f32 %v1895, %v1901
    %v1904 = vmul.f32 %v1902, 1.442695
    %v1905 = vpow.pop %v1904
    %v1906 = vmul.f32 %v1903, 1.442695
    %v1907 = vpow.pop %v1906
    %1908 = vadd.xlane.f32.xlu0 %v1905
    %v1909 = vpop.xlane.xlu0 %1908
    %1910 = vadd.xlane.f32.xlu0 %v1907
    %v1911 = vpop.xlane.xlu0 %1910
    %v1912 = vlog2.pop %v1909
    %v1913 = vmul.f32 %v1912, 0.6931472
    %v1914 = vlog2.pop %v1911
    %v1915 = vmul.f32 %v1914, 0.6931472
    %v1916 = vadd.f32 %v1899, %v1913
    %v1917 = vadd.f32 %v1901, %v1915
    %v1918 = vlaneseq
    %v1919 = vshrl.u32 %v1918, 7
    %v1920 = vadd.s32 %v1919, 8
    %v1921 = vlaneseq
    %v1922 = vand.u32 %v1921, 127
    %s1923 = smul.u32 0, 16
    %vm1924 = vcmp.eq.s32.totalorder %v1919, 0
    %vm1925 = vcmp.eq.s32.totalorder %v1920, 0
    %s1926 = sld [smem:[#allocation3 + %s1923]]
    %v1927 = vstv %s1926
    %v1928 = vsel %vm1924, %v1927, 0
    %v1929 = vsel %vm1925, %v1927, 0
    %vm1930 = vcmp.eq.s32.totalorder %v1919, 1
    %vm1931 = vcmp.eq.s32.totalorder %v1920, 1
    %s1932 = sadd.s32 %s1923, 1
    %s1933 = sld [smem:[#allocation3 + %s1932]]
    %v1934 = vstv %s1933
    %v1935 = vsel %vm1930, %v1934, %v1928
    %v1936 = vsel %vm1931, %v1934, %v1929
    %vm1937 = vcmp.eq.s32.totalorder %v1919, 2
    %vm1938 = vcmp.eq.s32.totalorder %v1920, 2
    %s1939 = sadd.s32 %s1923, 2
    %s1940 = sld [smem:[#allocation3 + %s1939]]
    %v1941 = vstv %s1940
    %v1942 = vsel %vm1937, %v1941, %v1935
    %v1943 = vsel %vm1938, %v1941, %v1936
    %vm1944 = vcmp.eq.s32.totalorder %v1919, 3
    %vm1945 = vcmp.eq.s32.totalorder %v1920, 3
    %s1946 = sadd.s32 %s1923, 3
    %s1947 = sld [smem:[#allocation3 + %s1946]]
    %v1948 = vstv %s1947
    %v1949 = vsel %vm1944, %v1948, %v1942
    %v1950 = vsel %vm1945, %v1948, %v1943
    %vm1951 = vcmp.eq.s32.totalorder %v1919, 4
    %vm1952 = vcmp.eq.s32.totalorder %v1920, 4
    %s1953 = sadd.s32 %s1923, 4
    %s1954 = sld [smem:[#allocation3 + %s1953]]
    %v1955 = vstv %s1954
    %v1956 = vsel %vm1951, %v1955, %v1949
    %v1957 = vsel %vm1952, %v1955, %v1950
    %vm1958 = vcmp.eq.s32.totalorder %v1919, 5
    %vm1959 = vcmp.eq.s32.totalorder %v1920, 5
    %s1960 = sadd.s32 %s1923, 5
    %s1961 = sld [smem:[#allocation3 + %s1960]]
    %v1962 = vstv %s1961
    %v1963 = vsel %vm1958, %v1962, %v1956
    %v1964 = vsel %vm1959, %v1962, %v1957
    %vm1965 = vcmp.eq.s32.totalorder %v1919, 6
    %vm1966 = vcmp.eq.s32.totalorder %v1920, 6
    %s1967 = sadd.s32 %s1923, 6
    %s1968 = sld [smem:[#allocation3 + %s1967]]
    %v1969 = vstv %s1968
    %v1970 = vsel %vm1965, %v1969, %v1963
    %v1971 = vsel %vm1966, %v1969, %v1964
    %vm1972 = vcmp.eq.s32.totalorder %v1919, 7
    %vm1973 = vcmp.eq.s32.totalorder %v1920, 7
    %s1974 = sadd.s32 %s1923, 7
    %s1975 = sld [smem:[#allocation3 + %s1974]]
    %v1976 = vstv %s1975
    %v1977 = vsel %vm1972, %v1976, %v1970
    %v1978 = vsel %vm1973, %v1976, %v1971
    %vm1979 = vcmp.eq.s32.totalorder %v1919, 8
    %vm1980 = vcmp.eq.s32.totalorder %v1920, 8
    %s1981 = sadd.s32 %s1923, 8
    %s1982 = sld [smem:[#allocation3 + %s1981]]
    %v1983 = vstv %s1982
    %v1984 = vsel %vm1979, %v1983, %v1977
    %v1985 = vsel %vm1980, %v1983, %v1978
    %vm1986 = vcmp.eq.s32.totalorder %v1919, 9
    %vm1987 = vcmp.eq.s32.totalorder %v1920, 9
    %s1988 = sadd.s32 %s1923, 9
    %s1989 = sld [smem:[#allocation3 + %s1988]]
    %v1990 = vstv %s1989
    %v1991 = vsel %vm1986, %v1990, %v1984
    %v1992 = vsel %vm1987, %v1990, %v1985
    %vm1993 = vcmp.eq.s32.totalorder %v1919, 10
    %vm1994 = vcmp.eq.s32.totalorder %v1920, 10
    %s1995 = sadd.s32 %s1923, 10
    %s1996 = sld [smem:[#allocation3 + %s1995]]
    %v1997 = vstv %s1996
    %v1998 = vsel %vm1993, %v1997, %v1991
    %v1999 = vsel %vm1994, %v1997, %v1992
    %vm2000 = vcmp.eq.s32.totalorder %v1919, 11
    %vm2001 = vcmp.eq.s32.totalorder %v1920, 11
    %s2002 = sadd.s32 %s1923, 11
    %s2003 = sld [smem:[#allocation3 + %s2002]]
    %v2004 = vstv %s2003
    %v2005 = vsel %vm2000, %v2004, %v1998
    %v2006 = vsel %vm2001, %v2004, %v1999
    %vm2007 = vcmp.eq.s32.totalorder %v1919, 12
    %vm2008 = vcmp.eq.s32.totalorder %v1920, 12
    %s2009 = sadd.s32 %s1923, 12
    %s2010 = sld [smem:[#allocation3 + %s2009]]
    %v2011 = vstv %s2010
    %v2012 = vsel %vm2007, %v2011, %v2005
    %v2013 = vsel %vm2008, %v2011, %v2006
    %vm2014 = vcmp.eq.s32.totalorder %v1919, 13
    %vm2015 = vcmp.eq.s32.totalorder %v1920, 13
    %s2016 = sadd.s32 %s1923, 13
    %s2017 = sld [smem:[#allocation3 + %s2016]]
    %v2018 = vstv %s2017
    %v2019 = vsel %vm2014, %v2018, %v2012
    %v2020 = vsel %vm2015, %v2018, %v2013
    %vm2021 = vcmp.eq.s32.totalorder %v1919, 14
    %vm2022 = vcmp.eq.s32.totalorder %v1920, 14
    %s2023 = sadd.s32 %s1923, 14
    %s2024 = sld [smem:[#allocation3 + %s2023]]
    %v2025 = vstv %s2024
    %v2026 = vsel %vm2021, %v2025, %v2019
    %v2027 = vsel %vm2022, %v2025, %v2020
    %vm2028 = vcmp.eq.s32.totalorder %v1919, 15
    %vm2029 = vcmp.eq.s32.totalorder %v1920, 15
    %s2030 = sadd.s32 %s1923, 15
    %s2031 = sld [smem:[#allocation3 + %s2030]]
    %v2032 = vstv %s2031
    %v2033 = vsel %vm2028, %v2032, %v2026
    %v2034 = vsel %vm2029, %v2032, %v2027
    %vm2035 = vcmp.eq.s32.totalorder %v1922, %v2033
    %vm2036 = vcmp.eq.s32.totalorder %v1922, %v2034
    %v2037 = vsel %vm2035, %v1892, 0.0
    %v2038 = vsel %vm2036, %v1895, 0.0
    %2039 = vadd.xlane.f32.xlu0 %v2037
    %v2040 = vpop.xlane.xlu0 %2039
    %2041 = vadd.xlane.f32.xlu0 %v2038
    %v2042 = vpop.xlane.xlu0 %2041
    %v2043 = vsub.f32 %v1916, %v2040
    %v2044 = vsub.f32 %v1917, %v2042
    %vm2045 = vcmp.eq.s32.totalorder %v1922, 4
    %v2046 = vsel %vm2045, %v2043, %v1892
    %v2047 = vsel %vm2045, %v2044, %v1895
    %2048 = vst [vmem:[#allocation7] sm:$0xff] %v2046
    %2049 = vst [vmem:[#allocation7 + $0x8] sm:$0xff] %v2047
    // Predicated region
    $region30: #{tpu_custom_call.1} parent=1 // pred_check
      _
    $region31: #{tpu_custom_call.1} parent=1 // pred_check_branch
      %2051 = sbr.rel (0) target = $region33
    $region32: #{tpu_custom_call.1} parent=1 // pred_region
      %s2053 = ssub.s32 256, 256
      %2054 = vsyncadd [#allocation6], %s2053
      %s2055 = sshll.u32 [#allocation7], 4
      %s2056 = int_to_ptr.vmem [resolvable:$true] %s2055
      %2061 = dma.vmem_to_hbm [thread:$0]  %s2056, 256, %s7, [#allocation6], 128, 128, 8
    $region33: #{tpu_custom_call.1} parent=1 // pred_fallthru
      _
    // Predicated region
    $region34: #{tpu_custom_call.1} parent=1 // pred_check
      _
    $region35: #{tpu_custom_call.1} parent=1 // pred_check_branch
      %2063 = sbr.rel (0) target = $region37
    $region36: #{tpu_custom_call.1} parent=1 // pred_region
      %2064 = dma.done [#allocation6], 256
    $region37: #{tpu_custom_call.1} parent=1 // pred_fallthru
      _
    %2065 = vsyncpa [#allocation5], 1
    %2066 = vsyncpa [#allocation6], 1

</llo_original>
